<compile_context>
chip_gen: v7x
topology: tpu7x:2x2x1
jax: 0.10.0
libtpu: 0.0.40
codegen_flags: <defaults>
</compile_context>

<pallas_src>
import jax
import jax.numpy as jnp
import numpy as np
from jax.experimental import pallas as pl
from jax.experimental.pallas import tpu as pltpu


_LANE = 128
_SUBLANE_BF16 = 16        # bf16 sublane pack -> batch tile must be a multiple
_NEG = -1e30              # bias for padded class columns -> exp() underflows to 0


def _round_up(n, m):
    return ((n + m - 1) // m) * m


def mlopt_kernel(x_ref, w0_ref, b0_ref, wr_ref, br_ref, wout_ref, bout_ref, out_ref):
    x = x_ref[...]                                          # bf16 (Tb, F)

    # Stage 0: Linear(no bias, BN scale folded in) -> BN shift -> ReLU
    # (Dropout p=0.0 == identity)
    h = jnp.dot(x, w0_ref[...], preferred_element_type=jnp.float32)
    h = jnp.maximum(h + b0_ref[...], 0.0)                   # f32 (Tb, Hp)

    # Residual blocks: h = fc(fc(h)) + h, fc = Linear(no bias) -> BN -> ReLU.
    # Static unroll is fine for a handful of blocks; switch to lax.fori_loop
    # with a dynamic wr_ref index if num_blocks grows large.
    num_blocks = wr_ref.shape[0]
    for r in range(num_blocks):
        w = wr_ref[r]                                       # bf16 (Hp, Hp)
        b = br_ref[pl.ds(r, 1), :]                          # f32  (1, Hp)

        def fc(z, w=w, b=b):
            y = jnp.dot(z.astype(jnp.bfloat16), w, preferred_element_type=jnp.float32)
            return jnp.maximum(y + b, 0.0)

        h = fc(fc(h)) + h

    # Output head: Linear(h_dim -> n_classes, bias=True). Padded class columns
    # carry a -1e30 bias so they contribute nothing to the softmax.
    logits = jnp.dot(h.astype(jnp.bfloat16), wout_ref[...],
                     preferred_element_type=jnp.float32) + bout_ref[...]

    # Numerically-stable softmax with EXACT reciprocal so rows sum to 1 up to
    # f32/bf16 rounding (approx=True cost ~3.6e-3 row-sum error previously).
    m = jnp.max(logits, axis=-1, keepdims=True)
    e = jnp.exp(logits - m)
    inv = pl.reciprocal(jnp.sum(e, axis=-1, keepdims=True))
    out_ref[...] = (e * inv).astype(out_ref.dtype)          # lane-dense bf16 (Tb, Cp)


def mlopt_forward(x, w0, s0, b0, wr, sr, br, wout, bout, *, tile_b=512, unpad=True):
    B, F = x.shape
    H = w0.shape[1]
    C = wout.shape[1]
    R = wr.shape[0]

    Hp = _round_up(H, _LANE)
    Cp = _round_up(C, _LANE)

    # Batch tile: multiple of 16 (bf16 sublane pack), clamped to the padded
    # batch so we never create partial tiles; Bp is an exact multiple of tile_b.
    tile_b = _round_up(max(int(tile_b), _SUBLANE_BF16), _SUBLANE_BF16)
    tile_b = min(tile_b, _round_up(B, _SUBLANE_BF16))
    Bp = _round_up(B, tile_b)
    assert tile_b % _SUBLANE_BF16 == 0 and Bp % tile_b == 0

    # Host-side, one-time prep: fold BN scale into weight columns, pad H/C to
    # lane-dense shapes (F and the batch are NOT lane-padded in HBM), cast
    # weights + input tile to bf16 (f32 accumulation inside the kernel).
    pad2 = lambda a, r, c: jnp.pad(a, ((0, r - a.shape[0]), (0, c - a.shape[1])))

    xp    = jnp.pad(x, ((0, Bp - B), (0, 0))).astype(jnp.bfloat16)       # (Bp, F)
    w0p   = pad2(w0 * s0, F, Hp).astype(jnp.bfloat16)                    # (F, Hp)
    b0p   = pad2(b0, 1, Hp).astype(jnp.float32)
    wrp   = jnp.pad(wr * sr[:, None, :],
                    ((0, 0), (0, Hp - H), (0, Hp - H))).astype(jnp.bfloat16)
    brp   = pad2(br, R, Hp).astype(jnp.float32)
    woutp = pad2(wout, Hp, Cp).astype(jnp.bfloat16)
    boutp = jnp.pad(bout, ((0, 0), (0, Cp - C)),
                    constant_values=_NEG).astype(jnp.float32)

    num_tiles = Bp // tile_b
    const = lambda shape: pl.BlockSpec(shape, lambda i, s=len(shape): (0,) * s)

    out = pl.pallas_call(
        mlopt_kernel,
        out_shape=jax.ShapeDtypeStruct((Bp, Cp), jnp.bfloat16),
        grid_spec=pl.GridSpec(
            grid=(num_tiles,),
            in_specs=[
                pl.BlockSpec((tile_b, F), lambda i: (i, 0)),  # x tile (pipelined)
                const((F, Hp)),         # folded w0        (VMEM resident)
                const((1, Hp)),         # bn0 shift
                const((R, Hp, Hp)),     # folded res weights
                const((R, Hp)),         # res shifts
                const((Hp, Cp)),        # wout
                const((1, Cp)),         # bout (padded classes = -1e30)
            ],
            out_specs=pl.BlockSpec((tile_b, Cp), lambda i: (i, 0)),
        ),
        compiler_params=pltpu.CompilerParams(
            dimension_semantics=("parallel",)),  # megacore-shard batch
    )(xp, w0p, b0p, wrp, brp, woutp, boutp)

    if unpad:
        return out[:B, :C]
    return out  # padded (Bp, Cp) bf16; consumer can fuse the slice


def fold_bn(gamma, beta, mean, var, eps=1e-5):
    scale = gamma / jnp.sqrt(var + eps)
    shift = beta - mean * scale
    return scale, shift


def ref_forward(x, w0, s0, b0, wr, sr, br, wout, bout):
    # Pure-JAX reference mirroring the kernel's bf16 quantization of weights
    # and dot inputs (f32 accumulation, f32 elementwise).
    bf = lambda a: a.astype(jnp.bfloat16).astype(jnp.float32)
    h = jnp.maximum(bf(x) @ bf(w0 * s0) + b0, 0.0)
    for r in range(wr.shape[0]):
        wrf = bf(wr[r] * sr[r:r + 1])
        fc = lambda z, wrf=wrf, r=r: jnp.maximum(bf(z) @ wrf + br[r:r + 1], 0.0)
        h = fc(fc(h)) + h
    logits = bf(h) @ bf(wout) + bout
    return jax.nn.softmax(logits, axis=-1)


if __name__ == "__main__":
    # Module config: num_layers=4 -> (num_layers // 2 - 1) = 1 ResBlock
    num_layers, h_dim, n_classes, n_features = 4, 32, 8, 16
    batch = 256                       # -> a single 256-row tile (tile_b auto-clamped)
    num_blocks = num_layers // 2 - 1

    key = jax.random.PRNGKey(0)
    ks = jax.random.split(key, 12)

    x = jax.random.normal(ks[0], (batch, n_features), dtype=jnp.float32)

    # Deterministic synthetic parameters (weights stored as [in, out]).
    w0 = jax.random.normal(ks[1], (n_features, h_dim), jnp.float32) * 0.2
    g0 = 1.0 + 0.1 * jax.random.normal(ks[2], (h_dim,), jnp.float32)
    be0 = 0.1 * jax.random.normal(ks[3], (h_dim,), jnp.float32)
    mu0 = 0.05 * jax.random.normal(ks[4], (h_dim,), jnp.float32)
    va0 = 1.0 + 0.1 * jnp.abs(jax.random.normal(ks[5], (h_dim,), jnp.float32))
    s0, b0 = fold_bn(g0, be0, mu0, va0)
    s0 = s0.reshape(1, h_dim)
    b0 = b0.reshape(1, h_dim)

    wr = jax.random.normal(ks[6], (num_blocks, h_dim, h_dim), jnp.float32) * 0.2
    gr = 1.0 + 0.1 * jax.random.normal(ks[7], (num_blocks, h_dim), jnp.float32)
    ber = 0.1 * jax.random.normal(ks[8], (num_blocks, h_dim), jnp.float32)
    mur = 0.05 * jax.random.normal(ks[9], (num_blocks, h_dim), jnp.float32)
    var = 1.0 + 0.1 * jnp.abs(jax.random.normal(ks[10], (num_blocks, h_dim), jnp.float32))
    sr, br = fold_bn(gr, ber, mur, var)

    wout = jax.random.normal(ks[11], (h_dim, n_classes), jnp.float32) * 0.2
    bout = 0.1 * jnp.arange(n_classes, dtype=jnp.float32).reshape(1, n_classes)

    out = mlopt_forward(x, w0, s0, b0, wr, sr, br, wout, bout)
    out = jax.block_until_ready(out)
    assert out.shape == (batch, n_classes)

    out_f32 = np.asarray(out).astype(np.float32)
    ref = np.asarray(ref_forward(x, w0, s0, b0, wr, sr, br, wout, bout))

    # Tolerance covers bf16 dot inputs (mirrored in ref) + bf16 output rounding
    # (half-ulp near 1.0 is ~2e-3); softmax itself is normalized exactly in f32.
    np.testing.assert_allclose(out_f32, ref, atol=5e-3, rtol=5e-3)
    np.testing.assert_allclose(out_f32.sum(-1), np.ones(batch), atol=5e-3)

    print("KERNEL_OK")
</pallas_src>

<mosaic_0001>
module attributes {stable_mosaic.version = 11 : i64} {
  func.func @mlopt_kernel(%arg0: i32, %arg1: memref<256x16xbf16, #tpu.memory_space<vmem>>, %arg2: memref<16x128xbf16, #tpu.memory_space<vmem>>, %arg3: memref<1x128xf32, #tpu.memory_space<vmem>>, %arg4: memref<1x128x128xbf16, #tpu.memory_space<vmem>>, %arg5: memref<1x128xf32, #tpu.memory_space<vmem>>, %arg6: memref<128x128xbf16, #tpu.memory_space<vmem>>, %arg7: memref<1x128xf32, #tpu.memory_space<vmem>>, %arg8: memref<256x128xbf16, #tpu.memory_space<vmem>>) attributes {dimension_semantics = [#tpu.dimension_semantics<parallel>], iteration_bounds = array<i64: 1>, scalar_prefetch = 0 : i64, scratch_operands = 0 : i64, tpu.core_type = #tpu.core_type<tc>, window_params = [{transform_indices = @transform_0, window_bounds = array<i64: 256, 16>}, {pipeline_mode = #tpu.pipeline_mode<synchronous>, transform_indices = @transform_1, window_bounds = array<i64: 16, 128>}, {pipeline_mode = #tpu.pipeline_mode<synchronous>, transform_indices = @transform_2, window_bounds = array<i64: 1, 128>}, {pipeline_mode = #tpu.pipeline_mode<synchronous>, transform_indices = @transform_3, window_bounds = array<i64: 1, 128, 128>}, {pipeline_mode = #tpu.pipeline_mode<synchronous>, transform_indices = @transform_4, window_bounds = array<i64: 1, 128>}, {pipeline_mode = #tpu.pipeline_mode<synchronous>, transform_indices = @transform_5, window_bounds = array<i64: 128, 128>}, {pipeline_mode = #tpu.pipeline_mode<synchronous>, transform_indices = @transform_6, window_bounds = array<i64: 1, 128>}, {transform_indices = @transform_7, window_bounds = array<i64: 256, 128>}]} {
    %c0 = arith.constant 0 : index
    %c0_0 = arith.constant 0 : index
    %0 = vector.load %arg1[%c0, %c0_0] : memref<256x16xbf16, #tpu.memory_space<vmem>>, vector<256x16xbf16>
    %c0_1 = arith.constant 0 : index
    %c0_2 = arith.constant 0 : index
    %1 = vector.load %arg2[%c0_1, %c0_2] : memref<16x128xbf16, #tpu.memory_space<vmem>>, vector<16x128xbf16>
    %cst = arith.constant dense<0.000000e+00> : vector<256x128xf32>
    %2 = tpu.matmul %0, %1, %cst {dimension_numbers = #tpu.dot_dimension_numbers<[1], [0], [0], [1], [0, 0, 1, 1], [], []>} : vector<256x16xbf16>, vector<16x128xbf16>, vector<256x128xf32> -> vector<256x128xf32>
    %c0_3 = arith.constant 0 : index
    %c0_4 = arith.constant 0 : index
    %3 = vector.load %arg3[%c0_3, %c0_4] : memref<1x128xf32, #tpu.memory_space<vmem>>, vector<1x128xf32>
    %4 = vector.broadcast %3 : vector<1x128xf32> to vector<256x128xf32>
    %5 = arith.addf %2, %4 : vector<256x128xf32>
    %cst_5 = arith.constant 0.000000e+00 : f32
    %6 = vector.broadcast %cst_5 : f32 to vector<256x128xf32>
    %7 = arith.maximumf %5, %6 : vector<256x128xf32>
    %c0_6 = arith.constant 0 : index
    %c0_7 = arith.constant 0 : index
    %c0_8 = arith.constant 0 : index
    %8 = vector.load %arg4[%c0_6, %c0_7, %c0_8] : memref<1x128x128xbf16, #tpu.memory_space<vmem>>, vector<1x128x128xbf16>
    %9 = vector.shape_cast %8 : vector<1x128x128xbf16> to vector<128x128xbf16>
    %c0_9 = arith.constant 0 : index
    %c0_10 = arith.constant 0 : index
    %10 = vector.load %arg5[%c0_9, %c0_10] : memref<1x128xf32, #tpu.memory_space<vmem>>, vector<1x128xf32>
    %11 = arith.truncf %7 : vector<256x128xf32> to vector<256x128xbf16>
    %cst_11 = arith.constant dense<0.000000e+00> : vector<256x128xf32>
    %12 = tpu.matmul %11, %9, %cst_11 {dimension_numbers = #tpu.dot_dimension_numbers<[1], [0], [0], [1], [0, 0, 1, 1], [], []>} : vector<256x128xbf16>, vector<128x128xbf16>, vector<256x128xf32> -> vector<256x128xf32>
    %13 = vector.broadcast %10 : vector<1x128xf32> to vector<256x128xf32>
    %14 = arith.addf %12, %13 : vector<256x128xf32>
    %cst_12 = arith.constant 0.000000e+00 : f32
    %15 = vector.broadcast %cst_12 : f32 to vector<256x128xf32>
    %16 = arith.maximumf %14, %15 : vector<256x128xf32>
    %17 = arith.truncf %16 : vector<256x128xf32> to vector<256x128xbf16>
    %cst_13 = arith.constant dense<0.000000e+00> : vector<256x128xf32>
    %18 = tpu.matmul %17, %9, %cst_13 {dimension_numbers = #tpu.dot_dimension_numbers<[1], [0], [0], [1], [0, 0, 1, 1], [], []>} : vector<256x128xbf16>, vector<128x128xbf16>, vector<256x128xf32> -> vector<256x128xf32>
    %19 = vector.broadcast %10 : vector<1x128xf32> to vector<256x128xf32>
    %20 = arith.addf %18, %19 : vector<256x128xf32>
    %cst_14 = arith.constant 0.000000e+00 : f32
    %21 = vector.broadcast %cst_14 : f32 to vector<256x128xf32>
    %22 = arith.maximumf %20, %21 : vector<256x128xf32>
    %23 = arith.addf %22, %7 : vector<256x128xf32>
    %24 = arith.truncf %23 : vector<256x128xf32> to vector<256x128xbf16>
    %c0_15 = arith.constant 0 : index
    %c0_16 = arith.constant 0 : index
    %25 = vector.load %arg6[%c0_15, %c0_16] : memref<128x128xbf16, #tpu.memory_space<vmem>>, vector<128x128xbf16>
    %cst_17 = arith.constant dense<0.000000e+00> : vector<256x128xf32>
    %26 = tpu.matmul %24, %25, %cst_17 {dimension_numbers = #tpu.dot_dimension_numbers<[1], [0], [0], [1], [0, 0, 1, 1], [], []>} : vector<256x128xbf16>, vector<128x128xbf16>, vector<256x128xf32> -> vector<256x128xf32>
    %c0_18 = arith.constant 0 : index
    %c0_19 = arith.constant 0 : index
    %27 = vector.load %arg7[%c0_18, %c0_19] : memref<1x128xf32, #tpu.memory_space<vmem>>, vector<1x128xf32>
    %28 = vector.broadcast %27 : vector<1x128xf32> to vector<256x128xf32>
    %29 = arith.addf %26, %28 : vector<256x128xf32>
    %cst_20 = arith.constant dense<0xFF800000> : vector<256xf32>
    %30 = vector.multi_reduction <maximumf>, %29, %cst_20 [1] : vector<256x128xf32> to vector<256xf32>
    %31 = vector.shape_cast %30 : vector<256xf32> to vector<256x1xf32>
    %32 = vector.broadcast %31 : vector<256x1xf32> to vector<256x128xf32>
    %33 = arith.subf %29, %32 : vector<256x128xf32>
    %34 = math.exp %33 : vector<256x128xf32>
    %cst_21 = arith.constant dense<0.000000e+00> : vector<256xf32>
    %35 = vector.multi_reduction <add>, %34, %cst_21 [1] : vector<256x128xf32> to vector<256xf32>
    %36 = vector.shape_cast %35 : vector<256xf32> to vector<256x1xf32>
    %37 = tpu.reciprocal %36 : vector<256x1xf32> -> vector<256x1xf32>
    %38 = vector.broadcast %37 : vector<256x1xf32> to vector<256x128xf32>
    %39 = arith.mulf %34, %38 : vector<256x128xf32>
    %40 = arith.truncf %39 : vector<256x128xf32> to vector<256x128xbf16>
    %c0_22 = arith.constant 0 : index
    %c0_23 = arith.constant 0 : index
    %41 = vector.load %arg8[%c0_22, %c0_23] : memref<256x128xbf16, #tpu.memory_space<vmem>>, vector<256x128xbf16>
    tpu.vector_store %arg8[%c0_22, %c0_23], %40 {strides = array<i32>} : memref<256x128xbf16, #tpu.memory_space<vmem>>, vector<256x128xbf16>,
    return
  }
  func.func @transform_0(%arg0: i32) -> (i32, i32) {
    %c0_i32 = arith.constant 0 : i32
    %c0_i32_0 = arith.constant 0 : i32
    return %arg0, %c0_i32 : i32, i32
  }
  func.func @transform_1(%arg0: i32) -> (i32, i32) {
    %c0_i32 = arith.constant 0 : i32
    %c0_i32_0 = arith.constant 0 : i32
    %c0_i32_1 = arith.constant 0 : i32
    return %c0_i32, %c0_i32_0 : i32, i32
  }
  func.func @transform_2(%arg0: i32) -> (i32, i32) {
    %c0_i32 = arith.constant 0 : i32
    %c0_i32_0 = arith.constant 0 : i32
    %c0_i32_1 = arith.constant 0 : i32
    return %c0_i32, %c0_i32_0 : i32, i32
  }
  func.func @transform_3(%arg0: i32) -> (i32, i32, i32) {
    %c0_i32 = arith.constant 0 : i32
    %c0_i32_0 = arith.constant 0 : i32
    %c0_i32_1 = arith.constant 0 : i32
    %c0_i32_2 = arith.constant 0 : i32
    return %c0_i32, %c0_i32_0, %c0_i32_1 : i32, i32, i32
  }
  func.func @transform_4(%arg0: i32) -> (i32, i32) {
    %c0_i32 = arith.constant 0 : i32
    %c0_i32_0 = arith.constant 0 : i32
    %c0_i32_1 = arith.constant 0 : i32
    return %c0_i32, %c0_i32_0 : i32, i32
  }
  func.func @transform_5(%arg0: i32) -> (i32, i32) {
    %c0_i32 = arith.constant 0 : i32
    %c0_i32_0 = arith.constant 0 : i32
    %c0_i32_1 = arith.constant 0 : i32
    return %c0_i32, %c0_i32_0 : i32, i32
  }
  func.func @transform_6(%arg0: i32) -> (i32, i32) {
    %c0_i32 = arith.constant 0 : i32
    %c0_i32_0 = arith.constant 0 : i32
    %c0_i32_1 = arith.constant 0 : i32
    return %c0_i32, %c0_i32_0 : i32, i32
  }
  func.func @transform_7(%arg0: i32) -> (i32, i32) {
    %c0_i32 = arith.constant 0 : i32
    %c0_i32_0 = arith.constant 0 : i32
    return %arg0, %c0_i32 : i32, i32
  }
}

</mosaic_0001>

<llo_original>
// kernel: tpu_custom_call.1
$region0: #{tpu_custom_call.1}
  #allocation0 [shape = 'u32[]', space=smem, size = 0x4, offset = 0x4, fixed_abs, tag = 'smem constant byte address 0x4 - core index']
  #allocation1 [shape = 'u32[144,128]{1,0:T(1,128)}', space=vmem, size = 0x12000, scoped, tag = 'internal scratch']
  %s0 = inlined_call_operand.vmem [shape: bf16[256,16], index: 0, kind: input, shape index: {}]
  %s1 = inlined_call_operand.vmem [shape: bf16[16,128], index: 1, kind: input, shape index: {}]
  %s2 = inlined_call_operand.vmem [shape: f32[1,128], index: 2, kind: input, shape index: {}]
  %s3 = inlined_call_operand.vmem [shape: bf16[1,128,128], index: 3, kind: input, shape index: {}]
  %s4 = inlined_call_operand.vmem [shape: f32[1,128], index: 4, kind: input, shape index: {}]
  %s5 = inlined_call_operand.vmem [shape: bf16[128,128], index: 5, kind: input, shape index: {}]
  %s6 = inlined_call_operand.vmem [shape: f32[1,128], index: 6, kind: input, shape index: {}]
  %s7 = inlined_call_operand.hbm [shape: bf16[256,128], index: 7, kind: output, shape index: {}]
  %s8 = sld [smem:[#allocation0]]
  $region38: #{tpu_custom_call.1} parent=0
    _
  %s10 = ssub.s32 1, %s8
  %s11 = scalar_select 0, %s10, %s8
  $region1: #{tpu_custom_call.1} parent=0
    #allocation2 [shape = 'u8[65536]{0}', space=vmem, size = 0x10000, scoped, tag = 'output window, operand 0, single buffered']
    #allocation3 [shape = 's32[1]{0}', space=sflag, size = 0x4, scoped, tag = 'scoped memory for tpu_custom_call.1']
    %12 = vsyncpa [#allocation3], 0
    // Predicated region
    $region2: #{tpu_custom_call.1} parent=1 // pred_check
      _
    $region3: #{tpu_custom_call.1} parent=1 // pred_check_branch
      %14 = sbr.rel (0) target = $region5
    $region4: #{tpu_custom_call.1} parent=1 // pred_region
      _
    $region5: #{tpu_custom_call.1} parent=1 // pred_fallthru
      _
    // Predicated region
    $region6: #{tpu_custom_call.1} parent=1 // pred_check
      _
    $region7: #{tpu_custom_call.1} parent=1 // pred_check_branch
      %16 = sbr.rel (0) target = $region9
    $region8: #{tpu_custom_call.1} parent=1 // pred_region
      _
    $region9: #{tpu_custom_call.1} parent=1 // pred_fallthru
      _
    // Predicated region
    $region10: #{tpu_custom_call.1} parent=1 // pred_check
      _
    $region11: #{tpu_custom_call.1} parent=1 // pred_check_branch
      %18 = sbr.rel (0) target = $region13
    $region12: #{tpu_custom_call.1} parent=1 // pred_region
      _
    $region13: #{tpu_custom_call.1} parent=1 // pred_fallthru
      _
    // Predicated region
    $region14: #{tpu_custom_call.1} parent=1 // pred_check
      _
    $region15: #{tpu_custom_call.1} parent=1 // pred_check_branch
      %20 = sbr.rel (0) target = $region17
    $region16: #{tpu_custom_call.1} parent=1 // pred_region
      _
    $region17: #{tpu_custom_call.1} parent=1 // pred_fallthru
      _
    // Predicated region
    $region18: #{tpu_custom_call.1} parent=1 // pred_check
      _
    $region19: #{tpu_custom_call.1} parent=1 // pred_check_branch
      %22 = sbr.rel (0) target = $region21
    $region20: #{tpu_custom_call.1} parent=1 // pred_region
      _
    $region21: #{tpu_custom_call.1} parent=1 // pred_fallthru
      _
    // Predicated region
    $region22: #{tpu_custom_call.1} parent=1 // pred_check
      _
    $region23: #{tpu_custom_call.1} parent=1 // pred_check_branch
      %24 = sbr.rel (0) target = $region25
    $region24: #{tpu_custom_call.1} parent=1 // pred_region
      _
    $region25: #{tpu_custom_call.1} parent=1 // pred_fallthru
      _
    // Predicated region
    $region26: #{tpu_custom_call.1} parent=1 // pred_check
      _
    $region27: #{tpu_custom_call.1} parent=1 // pred_check_branch
      %26 = sbr.rel (0) target = $region29
    $region28: #{tpu_custom_call.1} parent=1 // pred_region
      _
    $region29: #{tpu_custom_call.1} parent=1 // pred_fallthru
      _
    %v28 = vld [vmem:[%s0] sm:$0xf]
    %v29 = vld [vmem:[%s0 + $0x4] sm:$0xf]
    %v30 = vld [vmem:[%s0 + $0x8] sm:$0xf]
    %v31 = vld [vmem:[%s0 + $0xc] sm:$0xf]
    %v32 = vld [vmem:[%s0 + $0x10] sm:$0xf]
    %v33 = vld [vmem:[%s0 + $0x14] sm:$0xf]
    %v34 = vld [vmem:[%s0 + $0x18] sm:$0xf]
    %v35 = vld [vmem:[%s0 + $0x1c] sm:$0xf]
    %v36 = vld [vmem:[%s0 + $0x20] sm:$0xf]
    %v37 = vld [vmem:[%s0 + $0x24] sm:$0xf]
    %v38 = vld [vmem:[%s0 + $0x28] sm:$0xf]
    %v39 = vld [vmem:[%s0 + $0x2c] sm:$0xf]
    %v40 = vld [vmem:[%s0 + $0x30] sm:$0xf]
    %v41 = vld [vmem:[%s0 + $0x34] sm:$0xf]
    %v42 = vld [vmem:[%s0 + $0x38] sm:$0xf]
    %v43 = vld [vmem:[%s0 + $0x3c] sm:$0xf]
    %v44 = vld [vmem:[%s0 + $0x40] sm:$0xf]
    %v45 = vld [vmem:[%s0 + $0x44] sm:$0xf]
    %v46 = vld [vmem:[%s0 + $0x48] sm:$0xf]
    %v47 = vld [vmem:[%s0 + $0x4c] sm:$0xf]
    %v48 = vld [vmem:[%s0 + $0x50] sm:$0xf]
    %v49 = vld [vmem:[%s0 + $0x54] sm:$0xf]
    %v50 = vld [vmem:[%s0 + $0x58] sm:$0xf]
    %v51 = vld [vmem:[%s0 + $0x5c] sm:$0xf]
    %v52 = vld [vmem:[%s0 + $0x60] sm:$0xf]
    %v53 = vld [vmem:[%s0 + $0x64] sm:$0xf]
    %v54 = vld [vmem:[%s0 + $0x68] sm:$0xf]
    %v55 = vld [vmem:[%s0 + $0x6c] sm:$0xf]
    %v56 = vld [vmem:[%s0 + $0x70] sm:$0xf]
    %v57 = vld [vmem:[%s0 + $0x74] sm:$0xf]
    %v58 = vld [vmem:[%s0 + $0x78] sm:$0xf]
    %v59 = vld [vmem:[%s0 + $0x7c] sm:$0xf]
    %v60 = vld [vmem:[%s1] sm:$0xf]
    %v61 = vld [vmem:[%s1 + $0x4] sm:$0xf]
    %v62 = vld [vmem:[%s2] sm:$0x1]
    %v64 = vlaneseq
    %v65 = vshrl.u32 %v64, 7
    %v66 = vsub.s32 0, %v65
    %v67 = vrot.slane %v62, %v66
    %v101 = vunpack.c.l.b16 %v28
    %v102 = vunpack.c.l.b16 %v29
    %v103 = vunpack.c.l.b16 %v30
    %v104 = vunpack.c.l.b16 %v31
    %v105 = vunpack.c.l.b16 %v32
    %v106 = vunpack.c.l.b16 %v33
    %v107 = vunpack.c.l.b16 %v34
    %v108 = vunpack.c.l.b16 %v35
    %v109 = vunpack.c.l.b16 %v36
    %v110 = vunpack.c.l.b16 %v37
    %v111 = vunpack.c.l.b16 %v38
    %v112 = vunpack.c.l.b16 %v39
    %v113 = vunpack.c.l.b16 %v40
    %v114 = vunpack.c.l.b16 %v41
    %v115 = vunpack.c.l.b16 %v42
    %v116 = vunpack.c.l.b16 %v43
    %v117 = vunpack.c.l.b16 %v44
    %v118 = vunpack.c.l.b16 %v45
    %v119 = vunpack.c.l.b16 %v46
    %v120 = vunpack.c.l.b16 %v47
    %v121 = vunpack.c.l.b16 %v48
    %v122 = vunpack.c.l.b16 %v49
    %v123 = vunpack.c.l.b16 %v50
    %v124 = vunpack.c.l.b16 %v51
    %v125 = vunpack.c.l.b16 %v52
    %v126 = vunpack.c.l.b16 %v53
    %v127 = vunpack.c.l.b16 %v54
    %v128 = vunpack.c.l.b16 %v55
    %v129 = vunpack.c.l.b16 %v56
    %v130 = vunpack.c.l.b16 %v57
    %v131 = vunpack.c.l.b16 %v58
    %v132 = vunpack.c.l.b16 %v59
    %v133 = vpack.c.b16 %v102, %v101
    %v134 = vpack.c.b16 %v104, %v103
    %v135 = vpack.c.b16 %v106, %v105
    %v136 = vpack.c.b16 %v108, %v107
    %v137 = vpack.c.b16 %v110, %v109
    %v138 = vpack.c.b16 %v112, %v111
    %v139 = vpack.c.b16 %v114, %v113
    %v140 = vpack.c.b16 %v116, %v115
    %v141 = vpack.c.b16 %v118, %v117
    %v142 = vpack.c.b16 %v120, %v119
    %v143 = vpack.c.b16 %v122, %v121
    %v144 = vpack.c.b16 %v124, %v123
    %v145 = vpack.c.b16 %v126, %v125
    %v146 = vpack.c.b16 %v128, %v127
    %v147 = vpack.c.b16 %v130, %v129
    %v148 = vpack.c.b16 %v132, %v131
    %v151 = vunpack.c.l.b16 %v60
    %v152 = vunpack.c.l.b16 %v61
    %v153 = vpack.c.b16 %v152, %v151
    %vm155 = vcmask 130048
    %v157 = vsel %vm155, %v133, 0
    %v160 = vsel %vm155, %v134, 0
    %v163 = vsel %vm155, %v135, 0
    %v166 = vsel %vm155, %v136, 0
    %v169 = vsel %vm155, %v137, 0
    %v172 = vsel %vm155, %v138, 0
    %v175 = vsel %vm155, %v139, 0
    %v178 = vsel %vm155, %v140, 0
    %v181 = vsel %vm155, %v141, 0
    %v184 = vsel %vm155, %v142, 0
    %v187 = vsel %vm155, %v143, 0
    %v190 = vsel %vm155, %v144, 0
    %v193 = vsel %vm155, %v145, 0
    %v196 = vsel %vm155, %v146, 0
    %v199 = vsel %vm155, %v147, 0
    %v202 = vsel %vm155, %v148, 0
    %204 = vmatprep.subr.bf16.mxu0 0
    %205 = vmatpush1.bf16.msra.mxu0 %v153
    %206 = vmatprep.subr.bf16.mxu0 0
    %207 = vmatpush1.bf16.msra.mxu0 0
    %208 = vmatprep.subr.bf16.mxu0 0
    %209 = vmatpush1.bf16.msra.mxu0 0
    %210 = vmatprep.subr.bf16.mxu0 0
    %211 = vmatpush1.bf16.msra.mxu0 0
    %212 = vmatprep.subr.bf16.mxu0 0
    %213 = vmatpush1.bf16.msra.mxu0 0
    %214 = vmatprep.subr.bf16.mxu0 0
    %215 = vmatpush1.bf16.msra.mxu0 0
    %216 = vmatprep.subr.bf16.mxu0 0
    %217 = vmatpush1.bf16.msra.mxu0 0
    %218 = vmatprep.subr.bf16.mxu0 0
    %219 = vmatpush1.bf16.msra.mxu0 0
    %220 = vmatprep.subr.bf16.mxu0 0
    %221 = vmatpush1.bf16.msra.mxu0 0
    %222 = vmatprep.subr.bf16.mxu0 0
    %223 = vmatpush1.bf16.msra.mxu0 0
    %224 = vmatprep.subr.bf16.mxu0 0
    %225 = vmatpush1.bf16.msra.mxu0 0
    %226 = vmatprep.subr.bf16.mxu0 0
    %227 = vmatpush1.bf16.msra.mxu0 0
    %228 = vmatprep.subr.bf16.mxu0 0
    %229 = vmatpush1.bf16.msra.mxu0 0
    %230 = vmatprep.subr.bf16.mxu0 0
    %231 = vmatpush1.bf16.msra.mxu0 0
    %232 = vmatprep.subr.bf16.mxu0 0
    %233 = vmatpush1.bf16.msra.mxu0 0
    %234 = vmatprep.subr.bf16.mxu0 0
    %235 = vmatpush1.bf16.msra.mxu0 0
    %236 = vmatprep.mubr.bf16.mxu0 0
    %237 = vmatmul.mubr.bf16.gmra.mrb[0].mxu0 %v157
    %v238 = vpop.f32.mrb[0].mxu0
    %v239 = vadd.f32 %v67, %v238
    %v240 = vpop.f32.mrb[0].mxu0
    %v241 = vpop.f32.mrb[0].mxu0
    %v242 = vadd.f32 %v67, %v241
    %v243 = vpop.f32.mrb[0].mxu0
    %244 = vmatprep.mubr.bf16.mxu0 0
    %245 = vmatmul.mubr.bf16.gmra.mrb[0].mxu0 %v160
    %v246 = vpop.f32.mrb[0].mxu0
    %v247 = vadd.f32 %v67, %v246
    %v248 = vpop.f32.mrb[0].mxu0
    %v249 = vpop.f32.mrb[0].mxu0
    %v250 = vadd.f32 %v67, %v249
    %v251 = vpop.f32.mrb[0].mxu0
    %252 = vmatprep.mubr.bf16.mxu0 0
    %253 = vmatmul.mubr.bf16.gmra.mrb[0].mxu0 %v163
    %v254 = vpop.f32.mrb[0].mxu0
    %v255 = vadd.f32 %v67, %v254
    %v256 = vpop.f32.mrb[0].mxu0
    %v257 = vpop.f32.mrb[0].mxu0
    %v258 = vadd.f32 %v67, %v257
    %v259 = vpop.f32.mrb[0].mxu0
    %260 = vmatprep.mubr.bf16.mxu0 0
    %261 = vmatmul.mubr.bf16.gmra.mrb[0].mxu0 %v166
    %v262 = vpop.f32.mrb[0].mxu0
    %v263 = vadd.f32 %v67, %v262
    %v264 = vpop.f32.mrb[0].mxu0
    %v265 = vpop.f32.mrb[0].mxu0
    %v266 = vadd.f32 %v67, %v265
    %v267 = vpop.f32.mrb[0].mxu0
    %268 = vmatprep.mubr.bf16.mxu0 0
    %269 = vmatmul.mubr.bf16.gmra.mrb[0].mxu0 %v169
    %v270 = vpop.f32.mrb[0].mxu0
    %v271 = vadd.f32 %v67, %v270
    %v272 = vpop.f32.mrb[0].mxu0
    %v273 = vpop.f32.mrb[0].mxu0
    %v274 = vadd.f32 %v67, %v273
    %v275 = vpop.f32.mrb[0].mxu0
    %276 = vmatprep.mubr.bf16.mxu0 0
    %277 = vmatmul.mubr.bf16.gmra.mrb[0].mxu0 %v172
    %v278 = vpop.f32.mrb[0].mxu0
    %v279 = vadd.f32 %v67, %v278
    %v280 = vpop.f32.mrb[0].mxu0
    %v281 = vpop.f32.mrb[0].mxu0
    %v282 = vadd.f32 %v67, %v281
    %v283 = vpop.f32.mrb[0].mxu0
    %284 = vmatprep.mubr.bf16.mxu0 0
    %285 = vmatmul.mubr.bf16.gmra.mrb[0].mxu0 %v175
    %v286 = vpop.f32.mrb[0].mxu0
    %v287 = vadd.f32 %v67, %v286
    %v288 = vpop.f32.mrb[0].mxu0
    %v289 = vpop.f32.mrb[0].mxu0
    %v290 = vadd.f32 %v67, %v289
    %v291 = vpop.f32.mrb[0].mxu0
    %292 = vmatprep.mubr.bf16.mxu0 0
    %293 = vmatmul.mubr.bf16.gmra.mrb[0].mxu0 %v178
    %v294 = vpop.f32.mrb[0].mxu0
    %v295 = vadd.f32 %v67, %v294
    %v296 = vpop.f32.mrb[0].mxu0
    %v297 = vpop.f32.mrb[0].mxu0
    %v298 = vadd.f32 %v67, %v297
    %v299 = vpop.f32.mrb[0].mxu0
    %300 = vmatprep.mubr.bf16.mxu0 0
    %301 = vmatmul.mubr.bf16.gmra.mrb[0].mxu0 %v181
    %v302 = vpop.f32.mrb[0].mxu0
    %v303 = vadd.f32 %v67, %v302
    %v304 = vpop.f32.mrb[0].mxu0
    %v305 = vpop.f32.mrb[0].mxu0
    %v306 = vadd.f32 %v67, %v305
    %v307 = vpop.f32.mrb[0].mxu0
    %308 = vmatprep.mubr.bf16.mxu0 0
    %309 = vmatmul.mubr.bf16.gmra.mrb[0].mxu0 %v184
    %v310 = vpop.f32.mrb[0].mxu0
    %v311 = vadd.f32 %v67, %v310
    %v312 = vpop.f32.mrb[0].mxu0
    %v313 = vpop.f32.mrb[0].mxu0
    %v314 = vadd.f32 %v67, %v313
    %v315 = vpop.f32.mrb[0].mxu0
    %316 = vmatprep.mubr.bf16.mxu0 0
    %317 = vmatmul.mubr.bf16.gmra.mrb[0].mxu0 %v187
    %v318 = vpop.f32.mrb[0].mxu0
    %v319 = vadd.f32 %v67, %v318
    %v320 = vpop.f32.mrb[0].mxu0
    %v321 = vpop.f32.mrb[0].mxu0
    %v322 = vadd.f32 %v67, %v321
    %v323 = vpop.f32.mrb[0].mxu0
    %324 = vmatprep.mubr.bf16.mxu0 0
    %325 = vmatmul.mubr.bf16.gmra.mrb[0].mxu0 %v190
    %v326 = vpop.f32.mrb[0].mxu0
    %v327 = vadd.f32 %v67, %v326
    %v328 = vpop.f32.mrb[0].mxu0
    %v329 = vpop.f32.mrb[0].mxu0
    %v330 = vadd.f32 %v67, %v329
    %v331 = vpop.f32.mrb[0].mxu0
    %332 = vmatprep.mubr.bf16.mxu0 0
    %333 = vmatmul.mubr.bf16.gmra.mrb[0].mxu0 %v193
    %v334 = vpop.f32.mrb[0].mxu0
    %v335 = vadd.f32 %v67, %v334
    %v336 = vpop.f32.mrb[0].mxu0
    %v337 = vpop.f32.mrb[0].mxu0
    %v338 = vadd.f32 %v67, %v337
    %v339 = vpop.f32.mrb[0].mxu0
    %340 = vmatprep.mubr.bf16.mxu0 0
    %341 = vmatmul.mubr.bf16.gmra.mrb[0].mxu0 %v196
    %v342 = vpop.f32.mrb[0].mxu0
    %v343 = vadd.f32 %v67, %v342
    %v344 = vpop.f32.mrb[0].mxu0
    %v345 = vpop.f32.mrb[0].mxu0
    %v346 = vadd.f32 %v67, %v345
    %v347 = vpop.f32.mrb[0].mxu0
    %348 = vmatprep.mubr.bf16.mxu0 0
    %349 = vmatmul.mubr.bf16.gmra.mrb[0].mxu0 %v199
    %v350 = vpop.f32.mrb[0].mxu0
    %v351 = vadd.f32 %v67, %v350
    %v352 = vpop.f32.mrb[0].mxu0
    %v353 = vpop.f32.mrb[0].mxu0
    %v354 = vadd.f32 %v67, %v353
    %v355 = vpop.f32.mrb[0].mxu0
    %356 = vmatprep.mubr.bf16.mxu0 0
    %357 = vmatmul.mubr.bf16.gmra.mrb[0].mxu0 %v202
    %v358 = vpop.f32.mrb[0].mxu0
    %v359 = vadd.f32 %v67, %v358
    %v360 = vpop.f32.mrb[0].mxu0
    %v361 = vpop.f32.mrb[0].mxu0
    %v362 = vadd.f32 %v67, %v361
    %v363 = vpop.f32.mrb[0].mxu0
    %364 = vdwg.mxu0
    %v365 = vmax.f32 %v239, 0.0
    %v366 = vmax.f32 %v242, 0.0
    %v367 = vmax.f32 %v247, 0.0
    %v368 = vmax.f32 %v250, 0.0
    %v369 = vmax.f32 %v255, 0.0
    %v370 = vmax.f32 %v258, 0.0
    %v371 = vmax.f32 %v263, 0.0
    %v372 = vmax.f32 %v266, 0.0
    %v373 = vmax.f32 %v271, 0.0
    %v374 = vmax.f32 %v274, 0.0
    %v375 = vmax.f32 %v279, 0.0
    %v376 = vmax.f32 %v282, 0.0
    %v377 = vmax.f32 %v287, 0.0
    %v378 = vmax.f32 %v290, 0.0
    %v379 = vmax.f32 %v295, 0.0
    %v380 = vmax.f32 %v298, 0.0
    %v381 = vmax.f32 %v303, 0.0
    %v382 = vmax.f32 %v306, 0.0
    %v383 = vmax.f32 %v311, 0.0
    %v384 = vmax.f32 %v314, 0.0
    %v385 = vmax.f32 %v319, 0.0
    %v386 = vmax.f32 %v322, 0.0
    %v387 = vmax.f32 %v327, 0.0
    %v388 = vmax.f32 %v330, 0.0
    %v389 = vmax.f32 %v335, 0.0
    %v390 = vmax.f32 %v338, 0.0
    %v391 = vmax.f32 %v343, 0.0
    %v392 = vmax.f32 %v346, 0.0
    %v393 = vmax.f32 %v351, 0.0
    %v394 = vmax.f32 %v354, 0.0
    %v395 = vmax.f32 %v359, 0.0
    %v396 = vmax.f32 %v362, 0.0
    %v397 = vld [vmem:[%s3] sm:$0xf]
    %v398 = vld [vmem:[%s3 + $0x4] sm:$0xf]
    %v399 = vld [vmem:[%s3 + $0x8] sm:$0xf]
    %v400 = vld [vmem:[%s3 + $0xc] sm:$0xf]
    %v401 = vld [vmem:[%s3 + $0x10] sm:$0xf]
    %v402 = vld [vmem:[%s3 + $0x14] sm:$0xf]
    %v403 = vld [vmem:[%s3 + $0x18] sm:$0xf]
    %v404 = vld [vmem:[%s3 + $0x1c] sm:$0xf]
    %v405 = vld [vmem:[%s3 + $0x20] sm:$0xf]
    %v406 = vld [vmem:[%s3 + $0x24] sm:$0xf]
    %v407 = vld [vmem:[%s3 + $0x28] sm:$0xf]
    %v408 = vld [vmem:[%s3 + $0x2c] sm:$0xf]
    %v409 = vld [vmem:[%s3 + $0x30] sm:$0xf]
    %v410 = vld [vmem:[%s3 + $0x34] sm:$0xf]
    %v411 = vld [vmem:[%s3 + $0x38] sm:$0xf]
    %v412 = vld [vmem:[%s3 + $0x3c] sm:$0xf]
    %v413 = vld [vmem:[%s4] sm:$0x1]
    %v414 = vpack.c.bf16 %v366, %v365
    %v415 = vpack.c.bf16 %v368, %v367
    %v416 = vpack.c.bf16 %v370, %v369
    %v417 = vpack.c.bf16 %v372, %v371
    %v418 = vpack.c.bf16 %v374, %v373
    %v419 = vpack.c.bf16 %v376, %v375
    %v420 = vpack.c.bf16 %v378, %v377
    %v421 = vpack.c.bf16 %v380, %v379
    %v422 = vpack.c.bf16 %v382, %v381
    %v423 = vpack.c.bf16 %v384, %v383
    %v424 = vpack.c.bf16 %v386, %v385
    %v425 = vpack.c.bf16 %v388, %v387
    %v426 = vpack.c.bf16 %v390, %v389
    %v427 = vpack.c.bf16 %v392, %v391
    %v428 = vpack.c.bf16 %v394, %v393
    %v429 = vpack.c.bf16 %v396, %v395
    %v431 = vlaneseq
    %v432 = vshrl.u32 %v431, 7
    %v433 = vsub.s32 0, %v432
    %v434 = vrot.slane %v413, %v433
    %v452 = vunpack.c.l.b16 %v397
    %v453 = vunpack.c.l.b16 %v398
    %v454 = vunpack.c.l.b16 %v399
    %v455 = vunpack.c.l.b16 %v400
    %v456 = vunpack.c.l.b16 %v401
    %v457 = vunpack.c.l.b16 %v402
    %v458 = vunpack.c.l.b16 %v403
    %v459 = vunpack.c.l.b16 %v404
    %v460 = vunpack.c.l.b16 %v405
    %v461 = vunpack.c.l.b16 %v406
    %v462 = vunpack.c.l.b16 %v407
    %v463 = vunpack.c.l.b16 %v408
    %v464 = vunpack.c.l.b16 %v409
    %v465 = vunpack.c.l.b16 %v410
    %v466 = vunpack.c.l.b16 %v411
    %v467 = vunpack.c.l.b16 %v412
    %v468 = vpack.c.b16 %v453, %v452
    %v469 = vpack.c.b16 %v455, %v454
    %v470 = vpack.c.b16 %v457, %v456
    %v471 = vpack.c.b16 %v459, %v458
    %v472 = vpack.c.b16 %v461, %v460
    %v473 = vpack.c.b16 %v463, %v462
    %v474 = vpack.c.b16 %v465, %v464
    %v475 = vpack.c.b16 %v467, %v466
    %484 = vmatprep.subr.bf16.mxu0 0
    %485 = vmatpush1.bf16.msra.mxu0 %v468
    %486 = vmatprep.subr.bf16.mxu0 0
    %487 = vmatpush1.bf16.msra.mxu0 %v469
    %488 = vmatprep.subr.bf16.mxu0 0
    %489 = vmatpush1.bf16.msra.mxu0 %v470
    %490 = vmatprep.subr.bf16.mxu0 0
    %491 = vmatpush1.bf16.msra.mxu0 %v471
    %492 = vmatprep.subr.bf16.mxu0 0
    %493 = vmatpush1.bf16.msra.mxu0 %v472
    %494 = vmatprep.subr.bf16.mxu0 0
    %495 = vmatpush1.bf16.msra.mxu0 %v473
    %496 = vmatprep.subr.bf16.mxu0 0
    %497 = vmatpush1.bf16.msra.mxu0 %v474
    %498 = vmatprep.subr.bf16.mxu0 0
    %499 = vmatpush1.bf16.msra.mxu0 %v475
    %500 = vmatprep.subr.bf16.mxu0 0
    %501 = vmatpush1.bf16.msra.mxu0 0
    %502 = vmatprep.subr.bf16.mxu0 0
    %503 = vmatpush1.bf16.msra.mxu0 0
    %504 = vmatprep.subr.bf16.mxu0 0
    %505 = vmatpush1.bf16.msra.mxu0 0
    %506 = vmatprep.subr.bf16.mxu0 0
    %507 = vmatpush1.bf16.msra.mxu0 0
    %508 = vmatprep.subr.bf16.mxu0 0
    %509 = vmatpush1.bf16.msra.mxu0 0
    %510 = vmatprep.subr.bf16.mxu0 0
    %511 = vmatpush1.bf16.msra.mxu0 0
    %512 = vmatprep.subr.bf16.mxu0 0
    %513 = vmatpush1.bf16.msra.mxu0 0
    %514 = vmatprep.subr.bf16.mxu0 0
    %515 = vmatpush1.bf16.msra.mxu0 0
    %516 = vmatprep.mubr.bf16.mxu0 0
    %517 = vmatmul.mubr.bf16.gmra.mrb[0].mxu0 %v414
    %v518 = vpop.f32.mrb[0].mxu0
    %v519 = vadd.f32 %v434, %v518
    %v520 = vpop.f32.mrb[0].mxu0
    %v521 = vpop.f32.mrb[0].mxu0
    %v522 = vadd.f32 %v434, %v521
    %v523 = vpop.f32.mrb[0].mxu0
    %524 = vmatprep.mubr.bf16.mxu0 0
    %525 = vmatmul.mubr.bf16.gmra.mrb[0].mxu0 %v415
    %v526 = vpop.f32.mrb[0].mxu0
    %v527 = vadd.f32 %v434, %v526
    %v528 = vpop.f32.mrb[0].mxu0
    %v529 = vpop.f32.mrb[0].mxu0
    %v530 = vadd.f32 %v434, %v529
    %v531 = vpop.f32.mrb[0].mxu0
    %532 = vmatprep.mubr.bf16.mxu0 0
    %533 = vmatmul.mubr.bf16.gmra.mrb[0].mxu0 %v416
    %v534 = vpop.f32.mrb[0].mxu0
    %v535 = vadd.f32 %v434, %v534
    %v536 = vpop.f32.mrb[0].mxu0
    %v537 = vpop.f32.mrb[0].mxu0
    %v538 = vadd.f32 %v434, %v537
    %v539 = vpop.f32.mrb[0].mxu0
    %540 = vmatprep.mubr.bf16.mxu0 0
    %541 = vmatmul.mubr.bf16.gmra.mrb[0].mxu0 %v417
    %v542 = vpop.f32.mrb[0].mxu0
    %v543 = vadd.f32 %v434, %v542
    %v544 = vpop.f32.mrb[0].mxu0
    %v545 = vpop.f32.mrb[0].mxu0
    %v546 = vadd.f32 %v434, %v545
    %v547 = vpop.f32.mrb[0].mxu0
    %548 = vmatprep.mubr.bf16.mxu0 0
    %549 = vmatmul.mubr.bf16.gmra.mrb[0].mxu0 %v418
    %v550 = vpop.f32.mrb[0].mxu0
    %v551 = vadd.f32 %v434, %v550
    %v552 = vpop.f32.mrb[0].mxu0
    %v553 = vpop.f32.mrb[0].mxu0
    %v554 = vadd.f32 %v434, %v553
    %v555 = vpop.f32.mrb[0].mxu0
    %556 = vmatprep.mubr.bf16.mxu0 0
    %557 = vmatmul.mubr.bf16.gmra.mrb[0].mxu0 %v419
    %v558 = vpop.f32.mrb[0].mxu0
    %v559 = vadd.f32 %v434, %v558
    %v560 = vpop.f32.mrb[0].mxu0
    %v561 = vpop.f32.mrb[0].mxu0
    %v562 = vadd.f32 %v434, %v561
    %v563 = vpop.f32.mrb[0].mxu0
    %564 = vmatprep.mubr.bf16.mxu0 0
    %565 = vmatmul.mubr.bf16.gmra.mrb[0].mxu0 %v420
    %v566 = vpop.f32.mrb[0].mxu0
    %v567 = vadd.f32 %v434, %v566
    %v568 = vpop.f32.mrb[0].mxu0
    %v569 = vpop.f32.mrb[0].mxu0
    %v570 = vadd.f32 %v434, %v569
    %v571 = vpop.f32.mrb[0].mxu0
    %572 = vmatprep.mubr.bf16.mxu0 0
    %573 = vmatmul.mubr.bf16.gmra.mrb[0].mxu0 %v421
    %v574 = vpop.f32.mrb[0].mxu0
    %v575 = vadd.f32 %v434, %v574
    %v576 = vpop.f32.mrb[0].mxu0
    %v577 = vpop.f32.mrb[0].mxu0
    %v578 = vadd.f32 %v434, %v577
    %v579 = vpop.f32.mrb[0].mxu0
    %580 = vmatprep.mubr.bf16.mxu0 0
    %581 = vmatmul.mubr.bf16.gmra.mrb[0].mxu0 %v422
    %v582 = vpop.f32.mrb[0].mxu0
    %v583 = vadd.f32 %v434, %v582
    %v584 = vpop.f32.mrb[0].mxu0
    %v585 = vpop.f32.mrb[0].mxu0
    %v586 = vadd.f32 %v434, %v585
    %v587 = vpop.f32.mrb[0].mxu0
    %588 = vmatprep.mubr.bf16.mxu0 0
    %589 = vmatmul.mubr.bf16.gmra.mrb[0].mxu0 %v423
    %v590 = vpop.f32.mrb[0].mxu0
    %v591 = vadd.f32 %v434, %v590
    %v592 = vpop.f32.mrb[0].mxu0
    %v593 = vpop.f32.mrb[0].mxu0
    %v594 = vadd.f32 %v434, %v593
    %v595 = vpop.f32.mrb[0].mxu0
    %596 = vmatprep.mubr.bf16.mxu0 0
    %597 = vmatmul.mubr.bf16.gmra.mrb[0].mxu0 %v424
    %v598 = vpop.f32.mrb[0].mxu0
    %v599 = vadd.f32 %v434, %v598
    %v600 = vpop.f32.mrb[0].mxu0
    %v601 = vpop.f32.mrb[0].mxu0
    %v602 = vadd.f32 %v434, %v601
    %v603 = vpop.f32.mrb[0].mxu0
    %604 = vmatprep.mubr.bf16.mxu0 0
    %605 = vmatmul.mubr.bf16.gmra.mrb[0].mxu0 %v425
    %v606 = vpop.f32.mrb[0].mxu0
    %v607 = vadd.f32 %v434, %v606
    %v608 = vpop.f32.mrb[0].mxu0
    %v609 = vpop.f32.mrb[0].mxu0
    %v610 = vadd.f32 %v434, %v609
    %v611 = vpop.f32.mrb[0].mxu0
    %612 = vmatprep.mubr.bf16.mxu0 0
    %613 = vmatmul.mubr.bf16.gmra.mrb[0].mxu0 %v426
    %v614 = vpop.f32.mrb[0].mxu0
    %v615 = vadd.f32 %v434, %v614
    %v616 = vpop.f32.mrb[0].mxu0
    %v617 = vpop.f32.mrb[0].mxu0
    %v618 = vadd.f32 %v434, %v617
    %v619 = vpop.f32.mrb[0].mxu0
    %620 = vmatprep.mubr.bf16.mxu0 0
    %621 = vmatmul.mubr.bf16.gmra.mrb[0].mxu0 %v427
    %v622 = vpop.f32.mrb[0].mxu0
    %v623 = vadd.f32 %v434, %v622
    %v624 = vpop.f32.mrb[0].mxu0
    %v625 = vpop.f32.mrb[0].mxu0
    %v626 = vadd.f32 %v434, %v625
    %v627 = vpop.f32.mrb[0].mxu0
    %628 = vmatprep.mubr.bf16.mxu0 0
    %629 = vmatmul.mubr.bf16.gmra.mrb[0].mxu0 %v428
    %v630 = vpop.f32.mrb[0].mxu0
    %v631 = vadd.f32 %v434, %v630
    %v632 = vpop.f32.mrb[0].mxu0
    %v633 = vpop.f32.mrb[0].mxu0
    %v634 = vadd.f32 %v434, %v633
    %v635 = vpop.f32.mrb[0].mxu0
    %636 = vmatprep.mubr.bf16.mxu0 0
    %637 = vmatmul.mubr.bf16.gmra.mrb[0].mxu0 %v429
    %v638 = vpop.f32.mrb[0].mxu0
    %v639 = vadd.f32 %v434, %v638
    %v640 = vpop.f32.mrb[0].mxu0
    %v641 = vpop.f32.mrb[0].mxu0
    %v642 = vadd.f32 %v434, %v641
    %v643 = vpop.f32.mrb[0].mxu0
    %644 = vdwg.mxu0
    %v645 = vmax.f32 %v519, 0.0
    %v646 = vmax.f32 %v522, 0.0
    %v647 = vmax.f32 %v527, 0.0
    %v648 = vmax.f32 %v530, 0.0
    %v649 = vmax.f32 %v535, 0.0
    %v650 = vmax.f32 %v538, 0.0
    %v651 = vmax.f32 %v543, 0.0
    %v652 = vmax.f32 %v546, 0.0
    %v653 = vmax.f32 %v551, 0.0
    %v654 = vmax.f32 %v554, 0.0
    %v655 = vmax.f32 %v559, 0.0
    %v656 = vmax.f32 %v562, 0.0
    %v657 = vmax.f32 %v567, 0.0
    %v658 = vmax.f32 %v570, 0.0
    %v659 = vmax.f32 %v575, 0.0
    %v660 = vmax.f32 %v578, 0.0
    %v661 = vmax.f32 %v583, 0.0
    %v662 = vmax.f32 %v586, 0.0
    %v663 = vmax.f32 %v591, 0.0
    %v664 = vmax.f32 %v594, 0.0
    %v665 = vmax.f32 %v599, 0.0
    %v666 = vmax.f32 %v602, 0.0
    %v667 = vmax.f32 %v607, 0.0
    %v668 = vmax.f32 %v610, 0.0
    %v669 = vmax.f32 %v615, 0.0
    %v670 = vmax.f32 %v618, 0.0
    %v671 = vmax.f32 %v623, 0.0
    %v672 = vmax.f32 %v626, 0.0
    %v673 = vmax.f32 %v631, 0.0
    %v674 = vmax.f32 %v634, 0.0
    %v675 = vmax.f32 %v639, 0.0
    %v676 = vmax.f32 %v642, 0.0
    %v677 = vpack.c.bf16 %v646, %v645
    %v678 = vpack.c.bf16 %v648, %v647
    %v679 = vpack.c.bf16 %v650, %v649
    %v680 = vpack.c.bf16 %v652, %v651
    %v681 = vpack.c.bf16 %v654, %v653
    %v682 = vpack.c.bf16 %v656, %v655
    %v683 = vpack.c.bf16 %v658, %v657
    %v684 = vpack.c.bf16 %v660, %v659
    %v685 = vpack.c.bf16 %v662, %v661
    %v686 = vpack.c.bf16 %v664, %v663
    %v687 = vpack.c.bf16 %v666, %v665
    %v688 = vpack.c.bf16 %v668, %v667
    %v689 = vpack.c.bf16 %v670, %v669
    %v690 = vpack.c.bf16 %v672, %v671
    %v691 = vpack.c.bf16 %v674, %v673
    %v692 = vpack.c.bf16 %v676, %v675
    %693 = vmatprep.subr.bf16.mxu0 0
    %694 = vmatpush1.bf16.msra.mxu0 %v468
    %695 = vmatprep.subr.bf16.mxu0 0
    %696 = vmatpush1.bf16.msra.mxu0 %v469
    %697 = vmatprep.subr.bf16.mxu0 0
    %698 = vmatpush1.bf16.msra.mxu0 %v470
    %699 = vmatprep.subr.bf16.mxu0 0
    %700 = vmatpush1.bf16.msra.mxu0 %v471
    %701 = vmatprep.subr.bf16.mxu0 0
    %702 = vmatpush1.bf16.msra.mxu0 %v472
    %703 = vmatprep.subr.bf16.mxu0 0
    %704 = vmatpush1.bf16.msra.mxu0 %v473
    %705 = vmatprep.subr.bf16.mxu0 0
    %706 = vmatpush1.bf16.msra.mxu0 %v474
    %707 = vmatprep.subr.bf16.mxu0 0
    %708 = vmatpush1.bf16.msra.mxu0 %v475
    %709 = vmatprep.subr.bf16.mxu0 0
    %710 = vmatpush1.bf16.msra.mxu0 0
    %711 = vmatprep.subr.bf16.mxu0 0
    %712 = vmatpush1.bf16.msra.mxu0 0
    %713 = vmatprep.subr.bf16.mxu0 0
    %714 = vmatpush1.bf16.msra.mxu0 0
    %715 = vmatprep.subr.bf16.mxu0 0
    %716 = vmatpush1.bf16.msra.mxu0 0
    %717 = vmatprep.subr.bf16.mxu0 0
    %718 = vmatpush1.bf16.msra.mxu0 0
    %719 = vmatprep.subr.bf16.mxu0 0
    %720 = vmatpush1.bf16.msra.mxu0 0
    %721 = vmatprep.subr.bf16.mxu0 0
    %722 = vmatpush1.bf16.msra.mxu0 0
    %723 = vmatprep.subr.bf16.mxu0 0
    %724 = vmatpush1.bf16.msra.mxu0 0
    %725 = vmatprep.mubr.bf16.mxu0 0
    %726 = vmatmul.mubr.bf16.gmra.mrb[0].mxu0 %v677
    %v727 = vpop.f32.mrb[0].mxu0
    %v728 = vadd.f32 %v434, %v727
    %v729 = vpop.f32.mrb[0].mxu0
    %v730 = vpop.f32.mrb[0].mxu0
    %v731 = vadd.f32 %v434, %v730
    %v732 = vpop.f32.mrb[0].mxu0
    %733 = vmatprep.mubr.bf16.mxu0 0
    %734 = vmatmul.mubr.bf16.gmra.mrb[0].mxu0 %v678
    %v735 = vpop.f32.mrb[0].mxu0
    %v736 = vadd.f32 %v434, %v735
    %v737 = vpop.f32.mrb[0].mxu0
    %v738 = vpop.f32.mrb[0].mxu0
    %v739 = vadd.f32 %v434, %v738
    %v740 = vpop.f32.mrb[0].mxu0
    %741 = vmatprep.mubr.bf16.mxu0 0
    %742 = vmatmul.mubr.bf16.gmra.mrb[0].mxu0 %v679
    %v743 = vpop.f32.mrb[0].mxu0
    %v744 = vadd.f32 %v434, %v743
    %v745 = vpop.f32.mrb[0].mxu0
    %v746 = vpop.f32.mrb[0].mxu0
    %v747 = vadd.f32 %v434, %v746
    %v748 = vpop.f32.mrb[0].mxu0
    %749 = vmatprep.mubr.bf16.mxu0 0
    %750 = vmatmul.mubr.bf16.gmra.mrb[0].mxu0 %v680
    %v751 = vpop.f32.mrb[0].mxu0
    %v752 = vadd.f32 %v434, %v751
    %v753 = vpop.f32.mrb[0].mxu0
    %v754 = vpop.f32.mrb[0].mxu0
    %v755 = vadd.f32 %v434, %v754
    %v756 = vpop.f32.mrb[0].mxu0
    %757 = vmatprep.mubr.bf16.mxu0 0
    %758 = vmatmul.mubr.bf16.gmra.mrb[0].mxu0 %v681
    %v759 = vpop.f32.mrb[0].mxu0
    %v760 = vadd.f32 %v434, %v759
    %v761 = vpop.f32.mrb[0].mxu0
    %v762 = vpop.f32.mrb[0].mxu0
    %v763 = vadd.f32 %v434, %v762
    %v764 = vpop.f32.mrb[0].mxu0
    %765 = vmatprep.mubr.bf16.mxu0 0
    %766 = vmatmul.mubr.bf16.gmra.mrb[0].mxu0 %v682
    %v767 = vpop.f32.mrb[0].mxu0
    %v768 = vadd.f32 %v434, %v767
    %v769 = vpop.f32.mrb[0].mxu0
    %v770 = vpop.f32.mrb[0].mxu0
    %v771 = vadd.f32 %v434, %v770
    %v772 = vpop.f32.mrb[0].mxu0
    %773 = vmatprep.mubr.bf16.mxu0 0
    %774 = vmatmul.mubr.bf16.gmra.mrb[0].mxu0 %v683
    %v775 = vpop.f32.mrb[0].mxu0
    %v776 = vadd.f32 %v434, %v775
    %v777 = vpop.f32.mrb[0].mxu0
    %v778 = vpop.f32.mrb[0].mxu0
    %v779 = vadd.f32 %v434, %v778
    %v780 = vpop.f32.mrb[0].mxu0
    %781 = vmatprep.mubr.bf16.mxu0 0
    %782 = vmatmul.mubr.bf16.gmra.mrb[0].mxu0 %v684
    %v783 = vpop.f32.mrb[0].mxu0
    %v784 = vadd.f32 %v434, %v783
    %v785 = vpop.f32.mrb[0].mxu0
    %v786 = vpop.f32.mrb[0].mxu0
    %v787 = vadd.f32 %v434, %v786
    %v788 = vpop.f32.mrb[0].mxu0
    %789 = vmatprep.mubr.bf16.mxu0 0
    %790 = vmatmul.mubr.bf16.gmra.mrb[0].mxu0 %v685
    %v791 = vpop.f32.mrb[0].mxu0
    %v792 = vadd.f32 %v434, %v791
    %v793 = vpop.f32.mrb[0].mxu0
    %v794 = vpop.f32.mrb[0].mxu0
    %v795 = vadd.f32 %v434, %v794
    %v796 = vpop.f32.mrb[0].mxu0
    %797 = vmatprep.mubr.bf16.mxu0 0
    %798 = vmatmul.mubr.bf16.gmra.mrb[0].mxu0 %v686
    %v799 = vpop.f32.mrb[0].mxu0
    %v800 = vadd.f32 %v434, %v799
    %v801 = vpop.f32.mrb[0].mxu0
    %v802 = vpop.f32.mrb[0].mxu0
    %v803 = vadd.f32 %v434, %v802
    %v804 = vpop.f32.mrb[0].mxu0
    %805 = vmatprep.mubr.bf16.mxu0 0
    %806 = vmatmul.mubr.bf16.gmra.mrb[0].mxu0 %v687
    %v807 = vpop.f32.mrb[0].mxu0
    %v808 = vadd.f32 %v434, %v807
    %v809 = vpop.f32.mrb[0].mxu0
    %v810 = vpop.f32.mrb[0].mxu0
    %v811 = vadd.f32 %v434, %v810
    %v812 = vpop.f32.mrb[0].mxu0
    %813 = vmatprep.mubr.bf16.mxu0 0
    %814 = vmatmul.mubr.bf16.gmra.mrb[0].mxu0 %v688
    %v815 = vpop.f32.mrb[0].mxu0
    %v816 = vadd.f32 %v434, %v815
    %v817 = vpop.f32.mrb[0].mxu0
    %v818 = vpop.f32.mrb[0].mxu0
    %v819 = vadd.f32 %v434, %v818
    %v820 = vpop.f32.mrb[0].mxu0
    %821 = vmatprep.mubr.bf16.mxu0 0
    %822 = vmatmul.mubr.bf16.gmra.mrb[0].mxu0 %v689
    %v823 = vpop.f32.mrb[0].mxu0
    %v824 = vadd.f32 %v434, %v823
    %v825 = vpop.f32.mrb[0].mxu0
    %v826 = vpop.f32.mrb[0].mxu0
    %v827 = vadd.f32 %v434, %v826
    %v828 = vpop.f32.mrb[0].mxu0
    %829 = vmatprep.mubr.bf16.mxu0 0
    %830 = vmatmul.mubr.bf16.gmra.mrb[0].mxu0 %v690
    %v831 = vpop.f32.mrb[0].mxu0
    %v832 = vadd.f32 %v434, %v831
    %v833 = vpop.f32.mrb[0].mxu0
    %v834 = vpop.f32.mrb[0].mxu0
    %v835 = vadd.f32 %v434, %v834
    %v836 = vpop.f32.mrb[0].mxu0
    %837 = vmatprep.mubr.bf16.mxu0 0
    %838 = vmatmul.mubr.bf16.gmra.mrb[0].mxu0 %v691
    %v839 = vpop.f32.mrb[0].mxu0
    %v840 = vadd.f32 %v434, %v839
    %v841 = vpop.f32.mrb[0].mxu0
    %v842 = vpop.f32.mrb[0].mxu0
    %v843 = vadd.f32 %v434, %v842
    %v844 = vpop.f32.mrb[0].mxu0
    %845 = vmatprep.mubr.bf16.mxu0 0
    %846 = vmatmul.mubr.bf16.gmra.mrb[0].mxu0 %v692
    %v847 = vpop.f32.mrb[0].mxu0
    %v848 = vadd.f32 %v434, %v847
    %v849 = vpop.f32.mrb[0].mxu0
    %v850 = vpop.f32.mrb[0].mxu0
    %v851 = vadd.f32 %v434, %v850
    %v852 = vpop.f32.mrb[0].mxu0
    %853 = vdwg.mxu0
    %v854 = vmax.f32 %v728, 0.0
    %v855 = vmax.f32 %v731, 0.0
    %v856 = vmax.f32 %v736, 0.0
    %v857 = vmax.f32 %v739, 0.0
    %v858 = vmax.f32 %v744, 0.0
    %v859 = vmax.f32 %v747, 0.0
    %v860 = vmax.f32 %v752, 0.0
    %v861 = vmax.f32 %v755, 0.0
    %v862 = vmax.f32 %v760, 0.0
    %v863 = vmax.f32 %v763, 0.0
    %v864 = vmax.f32 %v768, 0.0
    %v865 = vmax.f32 %v771, 0.0
    %v866 = vmax.f32 %v776, 0.0
    %v867 = vmax.f32 %v779, 0.0
    %v868 = vmax.f32 %v784, 0.0
    %v869 = vmax.f32 %v787, 0.0
    %v870 = vmax.f32 %v792, 0.0
    %v871 = vmax.f32 %v795, 0.0
    %v872 = vmax.f32 %v800, 0.0
    %v873 = vmax.f32 %v803, 0.0
    %v874 = vmax.f32 %v808, 0.0
    %v875 = vmax.f32 %v811, 0.0
    %v876 = vmax.f32 %v816, 0.0
    %v877 = vmax.f32 %v819, 0.0
    %v878 = vmax.f32 %v824, 0.0
    %v879 = vmax.f32 %v827, 0.0
    %v880 = vmax.f32 %v832, 0.0
    %v881 = vmax.f32 %v835, 0.0
    %v882 = vmax.f32 %v840, 0.0
    %v883 = vmax.f32 %v843, 0.0
    %v884 = vmax.f32 %v848, 0.0
    %v885 = vmax.f32 %v851, 0.0
    %v886 = vadd.f32 %v854, %v365
    %v887 = vadd.f32 %v855, %v366
    %v888 = vadd.f32 %v856, %v367
    %v889 = vadd.f32 %v857, %v368
    %v890 = vadd.f32 %v858, %v369
    %v891 = vadd.f32 %v859, %v370
    %v892 = vadd.f32 %v860, %v371
    %v893 = vadd.f32 %v861, %v372
    %v894 = vadd.f32 %v862, %v373
    %v895 = vadd.f32 %v863, %v374
    %v896 = vadd.f32 %v864, %v375
    %v897 = vadd.f32 %v865, %v376
    %v898 = vadd.f32 %v866, %v377
    %v899 = vadd.f32 %v867, %v378
    %v900 = vadd.f32 %v868, %v379
    %v901 = vadd.f32 %v869, %v380
    %v902 = vadd.f32 %v870, %v381
    %v903 = vadd.f32 %v871, %v382
    %v904 = vadd.f32 %v872, %v383
    %v905 = vadd.f32 %v873, %v384
    %v906 = vadd.f32 %v874, %v385
    %v907 = vadd.f32 %v875, %v386
    %v908 = vadd.f32 %v876, %v387
    %v909 = vadd.f32 %v877, %v388
    %v910 = vadd.f32 %v878, %v389
    %v911 = vadd.f32 %v879, %v390
    %v912 = vadd.f32 %v880, %v391
    %v913 = vadd.f32 %v881, %v392
    %v914 = vadd.f32 %v882, %v393
    %v915 = vadd.f32 %v883, %v394
    %v916 = vadd.f32 %v884, %v395
    %v917 = vadd.f32 %v885, %v396
    %v918 = vpack.c.bf16 %v887, %v886
    %v919 = vpack.c.bf16 %v889, %v888
    %v920 = vpack.c.bf16 %v891, %v890
    %v921 = vpack.c.bf16 %v893, %v892
    %v922 = vpack.c.bf16 %v895, %v894
    %v923 = vpack.c.bf16 %v897, %v896
    %v924 = vpack.c.bf16 %v899, %v898
    %v925 = vpack.c.bf16 %v901, %v900
    %v926 = vpack.c.bf16 %v903, %v902
    %v927 = vpack.c.bf16 %v905, %v904
    %v928 = vpack.c.bf16 %v907, %v906
    %v929 = vpack.c.bf16 %v909, %v908
    %v930 = vpack.c.bf16 %v911, %v910
    %v931 = vpack.c.bf16 %v913, %v912
    %v932 = vpack.c.bf16 %v915, %v914
    %v933 = vpack.c.bf16 %v917, %v916
    %v934 = vld [vmem:[%s5] sm:$0xf]
    %v935 = vld [vmem:[%s5 + $0x4] sm:$0xf]
    %v936 = vld [vmem:[%s5 + $0x8] sm:$0xf]
    %v937 = vld [vmem:[%s5 + $0xc] sm:$0xf]
    %v938 = vld [vmem:[%s5 + $0x10] sm:$0xf]
    %v939 = vld [vmem:[%s5 + $0x14] sm:$0xf]
    %v940 = vld [vmem:[%s5 + $0x18] sm:$0xf]
    %v941 = vld [vmem:[%s5 + $0x1c] sm:$0xf]
    %v942 = vld [vmem:[%s5 + $0x20] sm:$0xf]
    %v943 = vld [vmem:[%s5 + $0x24] sm:$0xf]
    %v944 = vld [vmem:[%s5 + $0x28] sm:$0xf]
    %v945 = vld [vmem:[%s5 + $0x2c] sm:$0xf]
    %v946 = vld [vmem:[%s5 + $0x30] sm:$0xf]
    %v947 = vld [vmem:[%s5 + $0x34] sm:$0xf]
    %v948 = vld [vmem:[%s5 + $0x38] sm:$0xf]
    %v949 = vld [vmem:[%s5 + $0x3c] sm:$0xf]
    %v950 = vld [vmem:[%s6] sm:$0x1]
    %v952 = vlaneseq
    %v953 = vshrl.u32 %v952, 7
    %v954 = vsub.s32 0, %v953
    %v955 = vrot.slane %v950, %v954
    %v973 = vunpack.c.l.b16 %v934
    %v974 = vunpack.c.l.b16 %v935
    %v975 = vunpack.c.l.b16 %v936
    %v976 = vunpack.c.l.b16 %v937
    %v977 = vunpack.c.l.b16 %v938
    %v978 = vunpack.c.l.b16 %v939
    %v979 = vunpack.c.l.b16 %v940
    %v980 = vunpack.c.l.b16 %v941
    %v981 = vunpack.c.l.b16 %v942
    %v982 = vunpack.c.l.b16 %v943
    %v983 = vunpack.c.l.b16 %v944
    %v984 = vunpack.c.l.b16 %v945
    %v985 = vunpack.c.l.b16 %v946
    %v986 = vunpack.c.l.b16 %v947
    %v987 = vunpack.c.l.b16 %v948
    %v988 = vunpack.c.l.b16 %v949
    %v989 = vpack.c.b16 %v974, %v973
    %v990 = vpack.c.b16 %v976, %v975
    %v991 = vpack.c.b16 %v978, %v977
    %v992 = vpack.c.b16 %v980, %v979
    %v993 = vpack.c.b16 %v982, %v981
    %v994 = vpack.c.b16 %v984, %v983
    %v995 = vpack.c.b16 %v986, %v985
    %v996 = vpack.c.b16 %v988, %v987
    %1005 = vmatprep.subr.bf16.mxu0 0
    %1006 = vmatpush1.bf16.msra.mxu0 %v989
    %1007 = vmatprep.subr.bf16.mxu0 0
    %1008 = vmatpush1.bf16.msra.mxu0 %v990
    %1009 = vmatprep.subr.bf16.mxu0 0
    %1010 = vmatpush1.bf16.msra.mxu0 %v991
    %1011 = vmatprep.subr.bf16.mxu0 0
    %1012 = vmatpush1.bf16.msra.mxu0 %v992
    %1013 = vmatprep.subr.bf16.mxu0 0
    %1014 = vmatpush1.bf16.msra.mxu0 %v993
    %1015 = vmatprep.subr.bf16.mxu0 0
    %1016 = vmatpush1.bf16.msra.mxu0 %v994
    %1017 = vmatprep.subr.bf16.mxu0 0
    %1018 = vmatpush1.bf16.msra.mxu0 %v995
    %1019 = vmatprep.subr.bf16.mxu0 0
    %1020 = vmatpush1.bf16.msra.mxu0 %v996
    %1021 = vmatprep.subr.bf16.mxu0 0
    %1022 = vmatpush1.bf16.msra.mxu0 0
    %1023 = vmatprep.subr.bf16.mxu0 0
    %1024 = vmatpush1.bf16.msra.mxu0 0
    %1025 = vmatprep.subr.bf16.mxu0 0
    %1026 = vmatpush1.bf16.msra.mxu0 0
    %1027 = vmatprep.subr.bf16.mxu0 0
    %1028 = vmatpush1.bf16.msra.mxu0 0
    %1029 = vmatprep.subr.bf16.mxu0 0
    %1030 = vmatpush1.bf16.msra.mxu0 0
    %1031 = vmatprep.subr.bf16.mxu0 0
    %1032 = vmatpush1.bf16.msra.mxu0 0
    %1033 = vmatprep.subr.bf16.mxu0 0
    %1034 = vmatpush1.bf16.msra.mxu0 0
    %1035 = vmatprep.subr.bf16.mxu0 0
    %1036 = vmatpush1.bf16.msra.mxu0 0
    %1037 = vmatprep.mubr.bf16.mxu0 0
    %1038 = vmatmul.mubr.bf16.gmra.mrb[0].mxu0 %v918
    %v1039 = vpop.f32.mrb[0].mxu0
    %v1040 = vadd.f32 %v955, %v1039
    %v1041 = vpop.f32.mrb[0].mxu0
    %v1042 = vpop.f32.mrb[0].mxu0
    %v1043 = vadd.f32 %v955, %v1042
    %v1044 = vpop.f32.mrb[0].mxu0
    %1045 = vmatprep.mubr.bf16.mxu0 0
    %1046 = vmatmul.mubr.bf16.gmra.mrb[0].mxu0 %v919
    %v1047 = vpop.f32.mrb[0].mxu0
    %v1048 = vadd.f32 %v955, %v1047
    %v1049 = vpop.f32.mrb[0].mxu0
    %v1050 = vpop.f32.mrb[0].mxu0
    %v1051 = vadd.f32 %v955, %v1050
    %v1052 = vpop.f32.mrb[0].mxu0
    %1053 = vmatprep.mubr.bf16.mxu0 0
    %1054 = vmatmul.mubr.bf16.gmra.mrb[0].mxu0 %v920
    %v1055 = vpop.f32.mrb[0].mxu0
    %v1056 = vadd.f32 %v955, %v1055
    %v1057 = vpop.f32.mrb[0].mxu0
    %v1058 = vpop.f32.mrb[0].mxu0
    %v1059 = vadd.f32 %v955, %v1058
    %v1060 = vpop.f32.mrb[0].mxu0
    %1061 = vmatprep.mubr.bf16.mxu0 0
    %1062 = vmatmul.mubr.bf16.gmra.mrb[0].mxu0 %v921
    %v1063 = vpop.f32.mrb[0].mxu0
    %v1064 = vadd.f32 %v955, %v1063
    %v1065 = vpop.f32.mrb[0].mxu0
    %v1066 = vpop.f32.mrb[0].mxu0
    %v1067 = vadd.f32 %v955, %v1066
    %v1068 = vpop.f32.mrb[0].mxu0
    %1069 = vmatprep.mubr.bf16.mxu0 0
    %1070 = vmatmul.mubr.bf16.gmra.mrb[0].mxu0 %v922
    %v1071 = vpop.f32.mrb[0].mxu0
    %v1072 = vadd.f32 %v955, %v1071
    %v1073 = vpop.f32.mrb[0].mxu0
    %v1074 = vpop.f32.mrb[0].mxu0
    %v1075 = vadd.f32 %v955, %v1074
    %v1076 = vpop.f32.mrb[0].mxu0
    %1077 = vmatprep.mubr.bf16.mxu0 0
    %1078 = vmatmul.mubr.bf16.gmra.mrb[0].mxu0 %v923
    %v1079 = vpop.f32.mrb[0].mxu0
    %v1080 = vadd.f32 %v955, %v1079
    %v1081 = vpop.f32.mrb[0].mxu0
    %v1082 = vpop.f32.mrb[0].mxu0
    %v1083 = vadd.f32 %v955, %v1082
    %v1084 = vpop.f32.mrb[0].mxu0
    %1085 = vmatprep.mubr.bf16.mxu0 0
    %1086 = vmatmul.mubr.bf16.gmra.mrb[0].mxu0 %v924
    %v1087 = vpop.f32.mrb[0].mxu0
    %v1088 = vadd.f32 %v955, %v1087
    %v1089 = vpop.f32.mrb[0].mxu0
    %v1090 = vpop.f32.mrb[0].mxu0
    %v1091 = vadd.f32 %v955, %v1090
    %v1092 = vpop.f32.mrb[0].mxu0
    %1093 = vmatprep.mubr.bf16.mxu0 0
    %1094 = vmatmul.mubr.bf16.gmra.mrb[0].mxu0 %v925
    %v1095 = vpop.f32.mrb[0].mxu0
    %v1096 = vadd.f32 %v955, %v1095
    %v1097 = vpop.f32.mrb[0].mxu0
    %v1098 = vpop.f32.mrb[0].mxu0
    %v1099 = vadd.f32 %v955, %v1098
    %v1100 = vpop.f32.mrb[0].mxu0
    %1101 = vmatprep.mubr.bf16.mxu0 0
    %1102 = vmatmul.mubr.bf16.gmra.mrb[0].mxu0 %v926
    %v1103 = vpop.f32.mrb[0].mxu0
    %v1104 = vadd.f32 %v955, %v1103
    %v1105 = vpop.f32.mrb[0].mxu0
    %v1106 = vpop.f32.mrb[0].mxu0
    %v1107 = vadd.f32 %v955, %v1106
    %v1108 = vpop.f32.mrb[0].mxu0
    %1109 = vmatprep.mubr.bf16.mxu0 0
    %1110 = vmatmul.mubr.bf16.gmra.mrb[0].mxu0 %v927
    %v1111 = vpop.f32.mrb[0].mxu0
    %v1112 = vadd.f32 %v955, %v1111
    %v1113 = vpop.f32.mrb[0].mxu0
    %v1114 = vpop.f32.mrb[0].mxu0
    %v1115 = vadd.f32 %v955, %v1114
    %v1116 = vpop.f32.mrb[0].mxu0
    %1117 = vmatprep.mubr.bf16.mxu0 0
    %1118 = vmatmul.mubr.bf16.gmra.mrb[0].mxu0 %v928
    %v1119 = vpop.f32.mrb[0].mxu0
    %v1120 = vadd.f32 %v955, %v1119
    %v1121 = vpop.f32.mrb[0].mxu0
    %v1122 = vpop.f32.mrb[0].mxu0
    %v1123 = vadd.f32 %v955, %v1122
    %v1124 = vpop.f32.mrb[0].mxu0
    %1125 = vmatprep.mubr.bf16.mxu0 0
    %1126 = vmatmul.mubr.bf16.gmra.mrb[0].mxu0 %v929
    %v1127 = vpop.f32.mrb[0].mxu0
    %v1128 = vadd.f32 %v955, %v1127
    %v1129 = vpop.f32.mrb[0].mxu0
    %v1130 = vpop.f32.mrb[0].mxu0
    %v1131 = vadd.f32 %v955, %v1130
    %v1132 = vpop.f32.mrb[0].mxu0
    %1133 = vmatprep.mubr.bf16.mxu0 0
    %1134 = vmatmul.mubr.bf16.gmra.mrb[0].mxu0 %v930
    %v1135 = vpop.f32.mrb[0].mxu0
    %v1136 = vadd.f32 %v955, %v1135
    %v1137 = vpop.f32.mrb[0].mxu0
    %v1138 = vpop.f32.mrb[0].mxu0
    %v1139 = vadd.f32 %v955, %v1138
    %v1140 = vpop.f32.mrb[0].mxu0
    %1141 = vmatprep.mubr.bf16.mxu0 0
    %1142 = vmatmul.mubr.bf16.gmra.mrb[0].mxu0 %v931
    %v1143 = vpop.f32.mrb[0].mxu0
    %v1144 = vadd.f32 %v955, %v1143
    %v1145 = vpop.f32.mrb[0].mxu0
    %v1146 = vpop.f32.mrb[0].mxu0
    %v1147 = vadd.f32 %v955, %v1146
    %v1148 = vpop.f32.mrb[0].mxu0
    %1149 = vmatprep.mubr.bf16.mxu0 0
    %1150 = vmatmul.mubr.bf16.gmra.mrb[0].mxu0 %v932
    %v1151 = vpop.f32.mrb[0].mxu0
    %v1152 = vadd.f32 %v955, %v1151
    %v1153 = vpop.f32.mrb[0].mxu0
    %v1154 = vpop.f32.mrb[0].mxu0
    %v1155 = vadd.f32 %v955, %v1154
    %v1156 = vpop.f32.mrb[0].mxu0
    %1157 = vmatprep.mubr.bf16.mxu0 0
    %1158 = vmatmul.mubr.bf16.gmra.mrb[0].mxu0 %v933
    %v1159 = vpop.f32.mrb[0].mxu0
    %v1160 = vadd.f32 %v955, %v1159
    %v1161 = vpop.f32.mrb[0].mxu0
    %v1162 = vpop.f32.mrb[0].mxu0
    %v1163 = vadd.f32 %v955, %v1162
    %v1164 = vpop.f32.mrb[0].mxu0
    %1165 = vdwg.mxu0
    %1166 = vmax.xlane.f32.xlu0 %v1040
    %v1167 = vpop.xlane.xlu0 %1166
    %1168 = vmax.xlane.f32.xlu0 %v1043
    %v1169 = vpop.xlane.xlu0 %1168
    %1170 = vmax.xlane.f32.xlu0 %v1048
    %v1171 = vpop.xlane.xlu0 %1170
    %1172 = vmax.xlane.f32.xlu0 %v1051
    %v1173 = vpop.xlane.xlu0 %1172
    %1174 = vmax.xlane.f32.xlu0 %v1056
    %v1175 = vpop.xlane.xlu0 %1174
    %1176 = vmax.xlane.f32.xlu0 %v1059
    %v1177 = vpop.xlane.xlu0 %1176
    %1178 = vmax.xlane.f32.xlu0 %v1064
    %v1179 = vpop.xlane.xlu0 %1178
    %1180 = vmax.xlane.f32.xlu0 %v1067
    %v1181 = vpop.xlane.xlu0 %1180
    %1182 = vmax.xlane.f32.xlu0 %v1072
    %v1183 = vpop.xlane.xlu0 %1182
    %1184 = vmax.xlane.f32.xlu0 %v1075
    %v1185 = vpop.xlane.xlu0 %1184
    %1186 = vmax.xlane.f32.xlu0 %v1080
    %v1187 = vpop.xlane.xlu0 %1186
    %1188 = vmax.xlane.f32.xlu0 %v1083
    %v1189 = vpop.xlane.xlu0 %1188
    %1190 = vmax.xlane.f32.xlu0 %v1088
    %v1191 = vpop.xlane.xlu0 %1190
    %1192 = vmax.xlane.f32.xlu0 %v1091
    %v1193 = vpop.xlane.xlu0 %1192
    %1194 = vmax.xlane.f32.xlu0 %v1096
    %v1195 = vpop.xlane.xlu0 %1194
    %1196 = vmax.xlane.f32.xlu0 %v1099
    %v1197 = vpop.xlane.xlu0 %1196
    %1198 = vmax.xlane.f32.xlu0 %v1104
    %v1199 = vpop.xlane.xlu0 %1198
    %1200 = vmax.xlane.f32.xlu0 %v1107
    %v1201 = vpop.xlane.xlu0 %1200
    %1202 = vmax.xlane.f32.xlu0 %v1112
    %v1203 = vpop.xlane.xlu0 %1202
    %1204 = vmax.xlane.f32.xlu0 %v1115
    %v1205 = vpop.xlane.xlu0 %1204
    %1206 = vmax.xlane.f32.xlu0 %v1120
    %v1207 = vpop.xlane.xlu0 %1206
    %1208 = vmax.xlane.f32.xlu0 %v1123
    %v1209 = vpop.xlane.xlu0 %1208
    %1210 = vmax.xlane.f32.xlu0 %v1128
    %v1211 = vpop.xlane.xlu0 %1210
    %1212 = vmax.xlane.f32.xlu0 %v1131
    %v1213 = vpop.xlane.xlu0 %1212
    %1214 = vmax.xlane.f32.xlu0 %v1136
    %v1215 = vpop.xlane.xlu0 %1214
    %1216 = vmax.xlane.f32.xlu0 %v1139
    %v1217 = vpop.xlane.xlu0 %1216
    %1218 = vmax.xlane.f32.xlu0 %v1144
    %v1219 = vpop.xlane.xlu0 %1218
    %1220 = vmax.xlane.f32.xlu0 %v1147
    %v1221 = vpop.xlane.xlu0 %1220
    %1222 = vmax.xlane.f32.xlu0 %v1152
    %v1223 = vpop.xlane.xlu0 %1222
    %1224 = vmax.xlane.f32.xlu0 %v1155
    %v1225 = vpop.xlane.xlu0 %1224
    %1226 = vmax.xlane.f32.xlu0 %v1160
    %v1227 = vpop.xlane.xlu0 %1226
    %1228 = vmax.xlane.f32.xlu0 %v1163
    %v1229 = vpop.xlane.xlu0 %1228
    %v1230 = vsub.f32 %v1040, %v1167
    %v1231 = vsub.f32 %v1043, %v1169
    %v1232 = vsub.f32 %v1048, %v1171
    %v1233 = vsub.f32 %v1051, %v1173
    %v1234 = vsub.f32 %v1056, %v1175
    %v1235 = vsub.f32 %v1059, %v1177
    %v1236 = vsub.f32 %v1064, %v1179
    %v1237 = vsub.f32 %v1067, %v1181
    %v1238 = vsub.f32 %v1072, %v1183
    %v1239 = vsub.f32 %v1075, %v1185
    %v1240 = vsub.f32 %v1080, %v1187
    %v1241 = vsub.f32 %v1083, %v1189
    %v1242 = vsub.f32 %v1088, %v1191
    %v1243 = vsub.f32 %v1091, %v1193
    %v1244 = vsub.f32 %v1096, %v1195
    %v1245 = vsub.f32 %v1099, %v1197
    %v1246 = vsub.f32 %v1104, %v1199
    %v1247 = vsub.f32 %v1107, %v1201
    %v1248 = vsub.f32 %v1112, %v1203
    %v1249 = vsub.f32 %v1115, %v1205
    %v1250 = vsub.f32 %v1120, %v1207
    %v1251 = vsub.f32 %v1123, %v1209
    %v1252 = vsub.f32 %v1128, %v1211
    %v1253 = vsub.f32 %v1131, %v1213
    %v1254 = vsub.f32 %v1136, %v1215
    %v1255 = vsub.f32 %v1139, %v1217
    %v1256 = vsub.f32 %v1144, %v1219
    %v1257 = vsub.f32 %v1147, %v1221
    %v1258 = vsub.f32 %v1152, %v1223
    %v1259 = vsub.f32 %v1155, %v1225
    %v1260 = vsub.f32 %v1160, %v1227
    %v1261 = vsub.f32 %v1163, %v1229
    %v1262 = vmul.f32 %v1230, 1.442695
    %v1263 = vpow.pop %v1262
    %v1264 = vmul.f32 %v1231, 1.442695
    %v1265 = vpow.pop %v1264
    %v1266 = vmul.f32 %v1232, 1.442695
    %v1267 = vpow.pop %v1266
    %v1268 = vmul.f32 %v1233, 1.442695
    %v1269 = vpow.pop %v1268
    %v1270 = vmul.f32 %v1234, 1.442695
    %v1271 = vpow.pop %v1270
    %v1272 = vmul.f32 %v1235, 1.442695
    %v1273 = vpow.pop %v1272
    %v1274 = vmul.f32 %v1236, 1.442695
    %v1275 = vpow.pop %v1274
    %v1276 = vmul.f32 %v1237, 1.442695
    %v1277 = vpow.pop %v1276
    %v1278 = vmul.f32 %v1238, 1.442695
    %v1279 = vpow.pop %v1278
    %v1280 = vmul.f32 %v1239, 1.442695
    %v1281 = vpow.pop %v1280
    %v1282 = vmul.f32 %v1240, 1.442695
    %v1283 = vpow.pop %v1282
    %v1284 = vmul.f32 %v1241, 1.442695
    %v1285 = vpow.pop %v1284
    %v1286 = vmul.f32 %v1242, 1.442695
    %v1287 = vpow.pop %v1286
    %v1288 = vmul.f32 %v1243, 1.442695
    %v1289 = vpow.pop %v1288
    %v1290 = vmul.f32 %v1244, 1.442695
    %v1291 = vpow.pop %v1290
    %v1292 = vmul.f32 %v1245, 1.442695
    %v1293 = vpow.pop %v1292
    %v1294 = vmul.f32 %v1246, 1.442695
    %v1295 = vpow.pop %v1294
    %v1296 = vmul.f32 %v1247, 1.442695
    %v1297 = vpow.pop %v1296
    %v1298 = vmul.f32 %v1248, 1.442695
    %v1299 = vpow.pop %v1298
    %v1300 = vmul.f32 %v1249, 1.442695
    %v1301 = vpow.pop %v1300
    %v1302 = vmul.f32 %v1250, 1.442695
    %v1303 = vpow.pop %v1302
    %v1304 = vmul.f32 %v1251, 1.442695
    %v1305 = vpow.pop %v1304
    %v1306 = vmul.f32 %v1252, 1.442695
    %v1307 = vpow.pop %v1306
    %v1308 = vmul.f32 %v1253, 1.442695
    %v1309 = vpow.pop %v1308
    %v1310 = vmul.f32 %v1254, 1.442695
    %v1311 = vpow.pop %v1310
    %v1312 = vmul.f32 %v1255, 1.442695
    %v1313 = vpow.pop %v1312
    %v1314 = vmul.f32 %v1256, 1.442695
    %v1315 = vpow.pop %v1314
    %v1316 = vmul.f32 %v1257, 1.442695
    %v1317 = vpow.pop %v1316
    %v1318 = vmul.f32 %v1258, 1.442695
    %v1319 = vpow.pop %v1318
    %v1320 = vmul.f32 %v1259, 1.442695
    %v1321 = vpow.pop %v1320
    %v1322 = vmul.f32 %v1260, 1.442695
    %v1323 = vpow.pop %v1322
    %v1324 = vmul.f32 %v1261, 1.442695
    %v1325 = vpow.pop %v1324
    %1326 = vadd.xlane.f32.xlu0 %v1263
    %v1327 = vpop.xlane.xlu0 %1326
    %1328 = vadd.xlane.f32.xlu0 %v1265
    %v1329 = vpop.xlane.xlu0 %1328
    %1330 = vadd.xlane.f32.xlu0 %v1267
    %v1331 = vpop.xlane.xlu0 %1330
    %1332 = vadd.xlane.f32.xlu0 %v1269
    %v1333 = vpop.xlane.xlu0 %1332
    %1334 = vadd.xlane.f32.xlu0 %v1271
    %v1335 = vpop.xlane.xlu0 %1334
    %1336 = vadd.xlane.f32.xlu0 %v1273
    %v1337 = vpop.xlane.xlu0 %1336
    %1338 = vadd.xlane.f32.xlu0 %v1275
    %v1339 = vpop.xlane.xlu0 %1338
    %1340 = vadd.xlane.f32.xlu0 %v1277
    %v1341 = vpop.xlane.xlu0 %1340
    %1342 = vadd.xlane.f32.xlu0 %v1279
    %v1343 = vpop.xlane.xlu0 %1342
    %1344 = vadd.xlane.f32.xlu0 %v1281
    %v1345 = vpop.xlane.xlu0 %1344
    %1346 = vadd.xlane.f32.xlu0 %v1283
    %v1347 = vpop.xlane.xlu0 %1346
    %1348 = vadd.xlane.f32.xlu0 %v1285
    %v1349 = vpop.xlane.xlu0 %1348
    %1350 = vadd.xlane.f32.xlu0 %v1287
    %v1351 = vpop.xlane.xlu0 %1350
    %1352 = vadd.xlane.f32.xlu0 %v1289
    %v1353 = vpop.xlane.xlu0 %1352
    %1354 = vadd.xlane.f32.xlu0 %v1291
    %v1355 = vpop.xlane.xlu0 %1354
    %1356 = vadd.xlane.f32.xlu0 %v1293
    %v1357 = vpop.xlane.xlu0 %1356
    %1358 = vadd.xlane.f32.xlu0 %v1295
    %v1359 = vpop.xlane.xlu0 %1358
    %1360 = vadd.xlane.f32.xlu0 %v1297
    %v1361 = vpop.xlane.xlu0 %1360
    %1362 = vadd.xlane.f32.xlu0 %v1299
    %v1363 = vpop.xlane.xlu0 %1362
    %1364 = vadd.xlane.f32.xlu0 %v1301
    %v1365 = vpop.xlane.xlu0 %1364
    %1366 = vadd.xlane.f32.xlu0 %v1303
    %v1367 = vpop.xlane.xlu0 %1366
    %1368 = vadd.xlane.f32.xlu0 %v1305
    %v1369 = vpop.xlane.xlu0 %1368
    %1370 = vadd.xlane.f32.xlu0 %v1307
    %v1371 = vpop.xlane.xlu0 %1370
    %1372 = vadd.xlane.f32.xlu0 %v1309
    %v1373 = vpop.xlane.xlu0 %1372
    %1374 = vadd.xlane.f32.xlu0 %v1311
    %v1375 = vpop.xlane.xlu0 %1374
    %1376 = vadd.xlane.f32.xlu0 %v1313
    %v1377 = vpop.xlane.xlu0 %1376
    %1378 = vadd.xlane.f32.xlu0 %v1315
    %v1379 = vpop.xlane.xlu0 %1378
    %1380 = vadd.xlane.f32.xlu0 %v1317
    %v1381 = vpop.xlane.xlu0 %1380
    %1382 = vadd.xlane.f32.xlu0 %v1319
    %v1383 = vpop.xlane.xlu0 %1382
    %1384 = vadd.xlane.f32.xlu0 %v1321
    %v1385 = vpop.xlane.xlu0 %1384
    %1386 = vadd.xlane.f32.xlu0 %v1323
    %v1387 = vpop.xlane.xlu0 %1386
    %1388 = vadd.xlane.f32.xlu0 %v1325
    %v1389 = vpop.xlane.xlu0 %1388
    %v1390 = vrcp.pop %v1327
    %v1391 = vrcp.pop %v1329
    %v1392 = vrcp.pop %v1331
    %v1393 = vrcp.pop %v1333
    %v1394 = vrcp.pop %v1335
    %v1395 = vrcp.pop %v1337
    %v1396 = vrcp.pop %v1339
    %v1397 = vrcp.pop %v1341
    %v1398 = vrcp.pop %v1343
    %v1399 = vrcp.pop %v1345
    %v1400 = vrcp.pop %v1347
    %v1401 = vrcp.pop %v1349
    %v1402 = vrcp.pop %v1351
    %v1403 = vrcp.pop %v1353
    %v1404 = vrcp.pop %v1355
    %v1405 = vrcp.pop %v1357
    %v1406 = vrcp.pop %v1359
    %v1407 = vrcp.pop %v1361
    %v1408 = vrcp.pop %v1363
    %v1409 = vrcp.pop %v1365
    %v1410 = vrcp.pop %v1367
    %v1411 = vrcp.pop %v1369
    %v1412 = vrcp.pop %v1371
    %v1413 = vrcp.pop %v1373
    %v1414 = vrcp.pop %v1375
    %v1415 = vrcp.pop %v1377
    %v1416 = vrcp.pop %v1379
    %v1417 = vrcp.pop %v1381
    %v1418 = vrcp.pop %v1383
    %v1419 = vrcp.pop %v1385
    %v1420 = vrcp.pop %v1387
    %v1421 = vrcp.pop %v1389
    %v1422 = vmul.f32 %v1263, %v1390
    %v1423 = vmul.f32 %v1265, %v1391
    %v1424 = vmul.f32 %v1267, %v1392
    %v1425 = vmul.f32 %v1269, %v1393
    %v1426 = vmul.f32 %v1271, %v1394
    %v1427 = vmul.f32 %v1273, %v1395
    %v1428 = vmul.f32 %v1275, %v1396
    %v1429 = vmul.f32 %v1277, %v1397
    %v1430 = vmul.f32 %v1279, %v1398
    %v1431 = vmul.f32 %v1281, %v1399
    %v1432 = vmul.f32 %v1283, %v1400
    %v1433 = vmul.f32 %v1285, %v1401
    %v1434 = vmul.f32 %v1287, %v1402
    %v1435 = vmul.f32 %v1289, %v1403
    %v1436 = vmul.f32 %v1291, %v1404
    %v1437 = vmul.f32 %v1293, %v1405
    %v1438 = vmul.f32 %v1295, %v1406
    %v1439 = vmul.f32 %v1297, %v1407
    %v1440 = vmul.f32 %v1299, %v1408
    %v1441 = vmul.f32 %v1301, %v1409
    %v1442 = vmul.f32 %v1303, %v1410
    %v1443 = vmul.f32 %v1305, %v1411
    %v1444 = vmul.f32 %v1307, %v1412
    %v1445 = vmul.f32 %v1309, %v1413
    %v1446 = vmul.f32 %v1311, %v1414
    %v1447 = vmul.f32 %v1313, %v1415
    %v1448 = vmul.f32 %v1315, %v1416
    %v1449 = vmul.f32 %v1317, %v1417
    %v1450 = vmul.f32 %v1319, %v1418
    %v1451 = vmul.f32 %v1321, %v1419
    %v1452 = vmul.f32 %v1323, %v1420
    %v1453 = vmul.f32 %v1325, %v1421
    %v1454 = vpack.c.bf16 %v1423, %v1422
    %v1455 = vpack.c.bf16 %v1425, %v1424
    %v1456 = vpack.c.bf16 %v1427, %v1426
    %v1457 = vpack.c.bf16 %v1429, %v1428
    %v1458 = vpack.c.bf16 %v1431, %v1430
    %v1459 = vpack.c.bf16 %v1433, %v1432
    %v1460 = vpack.c.bf16 %v1435, %v1434
    %v1461 = vpack.c.bf16 %v1437, %v1436
    %v1462 = vpack.c.bf16 %v1439, %v1438
    %v1463 = vpack.c.bf16 %v1441, %v1440
    %v1464 = vpack.c.bf16 %v1443, %v1442
    %v1465 = vpack.c.bf16 %v1445, %v1444
    %v1466 = vpack.c.bf16 %v1447, %v1446
    %v1467 = vpack.c.bf16 %v1449, %v1448
    %v1468 = vpack.c.bf16 %v1451, %v1450
    %v1469 = vpack.c.bf16 %v1453, %v1452
    %v1486 = vunpack.c.l.b16 %v1454
    %v1487 = vunpack.c.h.b16 %v1454
    %v1488 = vunpack.c.l.b16 %v1455
    %v1489 = vunpack.c.h.b16 %v1455
    %v1490 = vunpack.c.l.b16 %v1456
    %v1491 = vunpack.c.h.b16 %v1456
    %v1492 = vunpack.c.l.b16 %v1457
    %v1493 = vunpack.c.h.b16 %v1457
    %v1494 = vunpack.c.l.b16 %v1458
    %v1495 = vunpack.c.h.b16 %v1458
    %v1496 = vunpack.c.l.b16 %v1459
    %v1497 = vunpack.c.h.b16 %v1459
    %v1498 = vunpack.c.l.b16 %v1460
    %v1499 = vunpack.c.h.b16 %v1460
    %v1500 = vunpack.c.l.b16 %v1461
    %v1501 = vunpack.c.h.b16 %v1461
    %v1502 = vunpack.c.l.b16 %v1462
    %v1503 = vunpack.c.h.b16 %v1462
    %v1504 = vunpack.c.l.b16 %v1463
    %v1505 = vunpack.c.h.b16 %v1463
    %v1506 = vunpack.c.l.b16 %v1464
    %v1507 = vunpack.c.h.b16 %v1464
    %v1508 = vunpack.c.l.b16 %v1465
    %v1509 = vunpack.c.h.b16 %v1465
    %v1510 = vunpack.c.l.b16 %v1466
    %v1511 = vunpack.c.h.b16 %v1466
    %v1512 = vunpack.c.l.b16 %v1467
    %v1513 = vunpack.c.h.b16 %v1467
    %v1514 = vunpack.c.l.b16 %v1468
    %v1515 = vunpack.c.h.b16 %v1468
    %v1516 = vunpack.c.l.b16 %v1469
    %v1517 = vunpack.c.h.b16 %v1469
    %v1518 = vpack.c.b16 %v1486, %v1486
    %v1519 = vpack.c.b16 %v1487, %v1487
    %v1520 = vpack.c.b16 %v1488, %v1488
    %v1521 = vpack.c.b16 %v1489, %v1489
    %v1522 = vpack.c.b16 %v1490, %v1490
    %v1523 = vpack.c.b16 %v1491, %v1491
    %v1524 = vpack.c.b16 %v1492, %v1492
    %v1525 = vpack.c.b16 %v1493, %v1493
    %v1526 = vpack.c.b16 %v1494, %v1494
    %v1527 = vpack.c.b16 %v1495, %v1495
    %v1528 = vpack.c.b16 %v1496, %v1496
    %v1529 = vpack.c.b16 %v1497, %v1497
    %v1530 = vpack.c.b16 %v1498, %v1498
    %v1531 = vpack.c.b16 %v1499, %v1499
    %v1532 = vpack.c.b16 %v1500, %v1500
    %v1533 = vpack.c.b16 %v1501, %v1501
    %v1534 = vpack.c.b16 %v1502, %v1502
    %v1535 = vpack.c.b16 %v1503, %v1503
    %v1536 = vpack.c.b16 %v1504, %v1504
    %v1537 = vpack.c.b16 %v1505, %v1505
    %v1538 = vpack.c.b16 %v1506, %v1506
    %v1539 = vpack.c.b16 %v1507, %v1507
    %v1540 = vpack.c.b16 %v1508, %v1508
    %v1541 = vpack.c.b16 %v1509, %v1509
    %v1542 = vpack.c.b16 %v1510, %v1510
    %v1543 = vpack.c.b16 %v1511, %v1511
    %v1544 = vpack.c.b16 %v1512, %v1512
    %v1545 = vpack.c.b16 %v1513, %v1513
    %v1546 = vpack.c.b16 %v1514, %v1514
    %v1547 = vpack.c.b16 %v1515, %v1515
    %v1548 = vpack.c.b16 %v1516, %v1516
    %v1549 = vpack.c.b16 %v1517, %v1517
    %1582 = vst [vmem:[#allocation2] sm:$0xf] %v1518
    %1583 = vst [vmem:[#allocation2 + $0x4] sm:$0xf] %v1519
    %1584 = vst [vmem:[#allocation2 + $0x8] sm:$0xf] %v1520
    %1585 = vst [vmem:[#allocation2 + $0xc] sm:$0xf] %v1521
    %1586 = vst [vmem:[#allocation2 + $0x10] sm:$0xf] %v1522
    %1587 = vst [vmem:[#allocation2 + $0x14] sm:$0xf] %v1523
    %1588 = vst [vmem:[#allocation2 + $0x18] sm:$0xf] %v1524
    %1589 = vst [vmem:[#allocation2 + $0x1c] sm:$0xf] %v1525
    %1590 = vst [vmem:[#allocation2 + $0x20] sm:$0xf] %v1526
    %1591 = vst [vmem:[#allocation2 + $0x24] sm:$0xf] %v1527
    %1592 = vst [vmem:[#allocation2 + $0x28] sm:$0xf] %v1528
    %1593 = vst [vmem:[#allocation2 + $0x2c] sm:$0xf] %v1529
    %1594 = vst [vmem:[#allocation2 + $0x30] sm:$0xf] %v1530
    %1595 = vst [vmem:[#allocation2 + $0x34] sm:$0xf] %v1531
    %1596 = vst [vmem:[#allocation2 + $0x38] sm:$0xf] %v1532
    %1597 = vst [vmem:[#allocation2 + $0x3c] sm:$0xf] %v1533
    %1598 = vst [vmem:[#allocation2 + $0x40] sm:$0xf] %v1534
    %1599 = vst [vmem:[#allocation2 + $0x44] sm:$0xf] %v1535
    %1600 = vst [vmem:[#allocation2 + $0x48] sm:$0xf] %v1536
    %1601 = vst [vmem:[#allocation2 + $0x4c] sm:$0xf] %v1537
    %1602 = vst [vmem:[#allocation2 + $0x50] sm:$0xf] %v1538
    %1603 = vst [vmem:[#allocation2 + $0x54] sm:$0xf] %v1539
    %1604 = vst [vmem:[#allocation2 + $0x58] sm:$0xf] %v1540
    %1605 = vst [vmem:[#allocation2 + $0x5c] sm:$0xf] %v1541
    %1606 = vst [vmem:[#allocation2 + $0x60] sm:$0xf] %v1542
    %1607 = vst [vmem:[#allocation2 + $0x64] sm:$0xf] %v1543
    %1608 = vst [vmem:[#allocation2 + $0x68] sm:$0xf] %v1544
    %1609 = vst [vmem:[#allocation2 + $0x6c] sm:$0xf] %v1545
    %1610 = vst [vmem:[#allocation2 + $0x70] sm:$0xf] %v1546
    %1611 = vst [vmem:[#allocation2 + $0x74] sm:$0xf] %v1547
    %1612 = vst [vmem:[#allocation2 + $0x78] sm:$0xf] %v1548
    %1613 = vst [vmem:[#allocation2 + $0x7c] sm:$0xf] %v1549
    // Predicated region
    $region30: #{tpu_custom_call.1} parent=1 // pred_check
      _
    $region31: #{tpu_custom_call.1} parent=1 // pred_check_branch
      %1615 = sbr.rel (0) target = $region33
    $region32: #{tpu_custom_call.1} parent=1 // pred_region
      %s1617 = ssub.s32 2048, 2048
      %1618 = vsyncadd [#allocation3], %s1617
      %s1619 = sshll.u32 [#allocation2], 4
      %s1620 = int_to_ptr.vmem [resolvable:$true] %s1619
      %1625 = dma.vmem_to_hbm [thread:$0]  %s1620, 2048, %s7, [#allocation3], 64, 64, 4
    $region33: #{tpu_custom_call.1} parent=1 // pred_fallthru
      _
    // Predicated region
    $region34: #{tpu_custom_call.1} parent=1 // pred_check
      _
    $region35: #{tpu_custom_call.1} parent=1 // pred_check_branch
      %1627 = sbr.rel (0) target = $region37
    $region36: #{tpu_custom_call.1} parent=1 // pred_region
      %1628 = dma.done [#allocation3], 2048
    $region37: #{tpu_custom_call.1} parent=1 // pred_fallthru
      _
    %1629 = vsyncpa [#allocation3], 1

</llo_original>
